<compile_context>
chip_gen: v7x
topology: tpu7x:2x2x1
jax: 0.10.0
libtpu: 0.0.40
codegen_flags: <defaults>
</compile_context>

<pallas_src>
import functools

import numpy as np

import jax
import jax.numpy as jnp
from jax.experimental import pallas as pl
from jax.experimental.pallas import tpu as pltpu


def _focal_loss_kernel(x_ref, t_ref, p_ref, b_ref, a_ref, o_ref, acc_ref, *,
                       C, W, gamma_int, gamma_f):
    i = pl.program_id(1)

    @pl.when(i == 0)
    def _():
        acc_ref[...] = jnp.zeros_like(acc_ref)

    x = x_ref[...].astype(jnp.float32)            # (TR, W) lane-packed logits
    t = t_ref[...]                                # (TR, W) target lane idx (-1 = pad)

    col = jax.lax.broadcasted_iota(jnp.int32, x.shape, 1)
    mask = col == t                               # one-hot per segment (all-false for pads)

    # Per-segment max: log2(C) roll+max tree (XLU slot), then broadcast the
    # segment max back to all C lanes of its segment with a constant matmul
    # (MXU slot, otherwise idle).
    y = x
    win = 1
    while win < C:
        s = min(win, C - win)
        y = jnp.maximum(y, pltpu.roll(y, shift=W - s, axis=1))
        win += s
    m_full = jnp.dot(y, p_ref[...],
                     precision=jax.lax.Precision.HIGHEST,
                     preferred_element_type=jnp.float32)           # (TR, W)

    xm = x - m_full                               # <= 0 within each segment
    e = jnp.exp(xm)                               # full-lane EUP work, no padding waste

    # Segment reductions / gathers on the MXU.
    s_g = jnp.dot(e, b_ref[...],
                  precision=jax.lax.Precision.HIGHEST,
                  preferred_element_type=jnp.float32)              # (TR, G) sum exp
    xt_g = jnp.dot(jnp.where(mask, xm, 0.0), b_ref[...],           # select-before-multiply
                   precision=jax.lax.Precision.HIGHEST,
                   preferred_element_type=jnp.float32)             # (TR, G) x[t] - max
    a_g = jnp.dot(mask.astype(jnp.float32), a_ref[...],
                  precision=jax.lax.Precision.HIGHEST,
                  preferred_element_type=jnp.float32)              # (TR, G) alpha[t]

    log_p = xt_g - jnp.log(s_g)                   # stable log softmax at target
    p = jnp.exp(log_p)
    q = 1.0 - p

    # (1 - p)^gamma : integer gamma specializes to repeated VPU multiplies.
    if gamma_int is not None:
        if gamma_int == 0:
            w = jnp.ones_like(q)
        else:
            w = q
            for _ in range(gamma_int - 1):
                w = w * q
    else:
        w = jnp.power(q, jnp.float32(gamma_f))

    # Padded (row, segment) slots have a_g == 0 -> contribute exactly 0.
    acc_ref[...] += -a_g * w * log_p

    @pl.when(i == pl.num_programs(1) - 1)
    def _():
        o_ref[...] = jnp.sum(acc_ref[...]) + jnp.zeros_like(o_ref)


def _choose_tile_rows(np_rows, w, vmem_cap):
    """Pick packed-row tile size; lane-padding and generation aware."""
    lanes = ((max(w, 1) + 127) // 128) * 128      # VMEM pads the last dim to 128 lanes
    budget = vmem_cap // 4                        # leave room for scoped/other usage
    # per packed row: f32 logits + i32 targets, double-buffered, + f32 accumulator,
    # with 2x headroom for in-kernel temporaries (exp, mask, matmul outputs).
    per_row = ((lanes * 4 * 2) * 2 + lanes * 4) * 2
    tr = budget // max(per_row, 1)
    tr = min(tr, 4096)
    tr = min(max(tr, 8), max(8, ((np_rows + 7) // 8) * 8))
    tr = max(8, (tr // 8) * 8)
    return int(tr)


def focal_loss(inputs, targets, alpha=None, gamma=2.0, size_average=True):
    """inputs: (N, C) float logits; targets: (N,) int class ids."""
    N, C = inputs.shape
    if alpha is None:
        alpha = jnp.ones((C,), dtype=jnp.float32)   # matches torch.ones(class_num, 1)
    alpha = jnp.asarray(alpha, dtype=jnp.float32).reshape(-1)

    G = max(1, 128 // C)        # original rows packed per 128-lane row
    W = G * C                   # packed lane width

    try:
        vmem_cap = int(pltpu.get_tpu_info().vmem_capacity_bytes)
    except Exception:
        vmem_cap = 64 * 1024 * 1024   # conservative (v7x-sized) fallback

    np_rows = -(-N // G)                                # packed rows needed
    tile_rows = _choose_tile_rows(np_rows, W, vmem_cap)
    tiles = -(-np_rows // tile_rows)
    nsplits = 2 if tiles >= 2 else 1                    # feeds both v7x TensorCores
    t_per_split = -(-tiles // nsplits)
    np_pad = nsplits * t_per_split * tile_rows
    n_pad = np_pad * G

    # Lane-pack logits: (N, C) -> (np_pad, G*C). Zero padding keeps all math finite.
    x = inputs
    if n_pad != N:
        x = jnp.pad(x, ((0, n_pad - N), (0, 0)))
    x_packed = x.reshape(np_pad, W)

    # Target lane index within the packed row (= segment*C + class), -1 for padding,
    # repeated across the C lanes of its segment so the kernel mask is one compare.
    t32 = targets.astype(jnp.int32).reshape(-1)
    if n_pad != N:
        t32 = jnp.pad(t32, (0, n_pad - N))
    seg = jnp.arange(n_pad, dtype=jnp.int32) % G
    t_lane = seg * C + t32
    t_lane = jnp.where(jnp.arange(n_pad) < N, t_lane, jnp.int32(-1))
    t_packed = jnp.repeat(t_lane.reshape(np_pad, G), C, axis=1)     # (np_pad, W) int32

    # Constant segment matrices (resident in VMEM).
    lane_seg = np.arange(W) // C
    lane_cls = np.arange(W) % C
    b_np = (lane_seg[:, None] == np.arange(G)[None, :]).astype(np.float32)       # (W, G) seg-sum
    p_np = (np.arange(W)[:, None] == (lane_seg * C)[None, :]).astype(np.float32)  # (W, W) max bcast
    bmat = jnp.asarray(b_np)
    pmat = jnp.asarray(p_np)
    amat = bmat * alpha[lane_cls][:, None]    # alpha[class] folded into the segment-sum matrix

    g = float(gamma)
    gamma_int = int(g) if (g.is_integer() and 0.0 <= g <= 8.0) else None

    kernel = functools.partial(_focal_loss_kernel, C=C, W=W,
                               gamma_int=gamma_int, gamma_f=g)

    out = pl.pallas_call(
        kernel,
        out_shape=jax.ShapeDtypeStruct((nsplits, 8, 128), jnp.float32),
        grid_spec=pltpu.PrefetchScalarGridSpec(
            num_scalar_prefetch=0,
            grid=(nsplits, t_per_split),
            in_specs=[
                pl.BlockSpec((tile_rows, W), lambda c, i: (c * t_per_split + i, 0)),
                pl.BlockSpec((tile_rows, W), lambda c, i: (c * t_per_split + i, 0)),
                pl.BlockSpec((W, W), lambda c, i: (0, 0)),   # max-broadcast matrix (resident)
                pl.BlockSpec((W, G), lambda c, i: (0, 0)),   # segment-sum matrix (resident)
                pl.BlockSpec((W, G), lambda c, i: (0, 0)),   # alpha-weighted matrix (resident)
            ],
            out_specs=pl.BlockSpec((1, 8, 128), lambda c, i: (c, 0, 0)),
            scratch_shapes=[pltpu.VMEM((tile_rows, G), jnp.float32)],
        ),
        compiler_params=pltpu.CompilerParams(
            dimension_semantics=("parallel", "arbitrary"),
            vmem_limit_bytes=min(int(vmem_cap * 3 // 4), 64 * 1024 * 1024),
        ),
    )(x_packed, t_packed, pmat, bmat, amat)

    loss = jnp.sum(out[:, 0, 0])
    if size_average:
        loss = loss / jnp.float32(N)
    return loss


def _focal_loss_ref(inputs, targets, alpha, gamma, size_average=True):
    p = jax.nn.softmax(inputs.astype(jnp.float32), axis=1)
    probs = jnp.take_along_axis(p, targets.reshape(-1, 1), axis=1)
    a = alpha[targets].reshape(-1, 1)
    batch_loss = -a * (1.0 - probs) ** gamma * jnp.log(probs)
    return batch_loss.mean() if size_average else batch_loss.sum()


if __name__ == "__main__":
    key = jax.random.PRNGKey(0)
    N, C = 8, 4
    k1, k2 = jax.random.split(key)
    inputs = jax.random.normal(k1, (N, C), dtype=jnp.float32)
    targets = jax.random.randint(k2, (N,), 0, C, dtype=jnp.int32)
    alpha = jnp.ones((C,), dtype=jnp.float32)   # default alpha=None -> ones(class_num)

    loss = focal_loss(inputs, targets, alpha=alpha, gamma=2.0, size_average=True)
    jax.block_until_ready(loss)
    ref = _focal_loss_ref(inputs, targets, alpha, 2.0, size_average=True)
    assert jnp.allclose(loss, ref, rtol=1e-4, atol=1e-5), (loss, ref)

    # also check the sum (size_average=False) path
    loss_sum = focal_loss(inputs, targets, alpha=alpha, gamma=2.0, size_average=False)
    jax.block_until_ready(loss_sum)
    ref_sum = _focal_loss_ref(inputs, targets, alpha, 2.0, size_average=False)
    assert jnp.allclose(loss_sum, ref_sum, rtol=1e-4, atol=1e-5), (loss_sum, ref_sum)

    print("KERNEL_OK")
</pallas_src>

<mosaic_0001>
module attributes {stable_mosaic.version = 11 : i64} {
  func.func @_focal_loss_kernel(%arg0: i32, %arg1: i32, %arg2: memref<8x128xf32, #tpu.memory_space<vmem>>, %arg3: memref<8x128xi32, #tpu.memory_space<vmem>>, %arg4: memref<128x128xf32, #tpu.memory_space<vmem>>, %arg5: memref<128x32xf32, #tpu.memory_space<vmem>>, %arg6: memref<128x32xf32, #tpu.memory_space<vmem>>, %arg7: memref<1x8x128xf32, #tpu.memory_space<vmem>>, %arg8: memref<8x32xf32, #tpu.memory_space<vmem>>) attributes {dimension_semantics = [#tpu.dimension_semantics<parallel>, #tpu.dimension_semantics<arbitrary>], iteration_bounds = array<i64: 1, 1>, scalar_prefetch = 0 : i64, scratch_operands = 1 : i64, tpu.core_type = #tpu.core_type<tc>, window_params = [{transform_indices = @transform_0, window_bounds = array<i64: 8, 128>}, {transform_indices = @transform_1, window_bounds = array<i64: 8, 128>}, {pipeline_mode = #tpu.pipeline_mode<synchronous>, transform_indices = @transform_2, window_bounds = array<i64: 128, 128>}, {pipeline_mode = #tpu.pipeline_mode<synchronous>, transform_indices = @transform_3, window_bounds = array<i64: 128, 32>}, {pipeline_mode = #tpu.pipeline_mode<synchronous>, transform_indices = @transform_4, window_bounds = array<i64: 128, 32>}, {transform_indices = @transform_5, window_bounds = array<i64: 1, 8, 128>}]} {
    %c0_i32 = arith.constant 0 : i32
    %0 = arith.cmpi eq, %arg1, %c0_i32 : i32
    %1 = arith.extui %0 : i1 to i32
    %c0_i32_0 = arith.constant 0 : i32
    %2 = arith.cmpi ne, %1, %c0_i32_0 : i32
    scf.if %2 {
      %cst_24 = arith.constant 0.000000e+00 : f32
      %41 = vector.broadcast %cst_24 : f32 to vector<8x32xf32>
      %c0_25 = arith.constant 0 : index
      %c0_26 = arith.constant 0 : index
      %42 = vector.load %arg8[%c0_25, %c0_26] : memref<8x32xf32, #tpu.memory_space<vmem>>, vector<8x32xf32>
      tpu.vector_store %arg8[%c0_25, %c0_26], %41 {strides = array<i32>} : memref<8x32xf32, #tpu.memory_space<vmem>>, vector<8x32xf32>,
    } else {
    }
    %c0 = arith.constant 0 : index
    %c0_1 = arith.constant 0 : index
    %3 = vector.load %arg2[%c0, %c0_1] : memref<8x128xf32, #tpu.memory_space<vmem>>, vector<8x128xf32>
    %c0_2 = arith.constant 0 : index
    %c0_3 = arith.constant 0 : index
    %4 = vector.load %arg3[%c0_2, %c0_3] : memref<8x128xi32, #tpu.memory_space<vmem>>, vector<8x128xi32>
    %5 = tpu.iota {dimensions = array<i32: 1>} : vector<8x128xi32>
    %6 = arith.cmpi eq, %5, %4 : vector<8x128xi32>
    %c127_i32 = arith.constant 127 : i32
    %7 = tpu.dynamic_rotate %3 by %c127_i32 dim 1 : vector<8x128xf32>, i32 -> vector<8x128xf32>
    %8 = arith.maximumf %3, %7 : vector<8x128xf32>
    %c126_i32 = arith.constant 126 : i32
    %9 = tpu.dynamic_rotate %8 by %c126_i32 dim 1 : vector<8x128xf32>, i32 -> vector<8x128xf32>
    %10 = arith.maximumf %8, %9 : vector<8x128xf32>
    %c0_4 = arith.constant 0 : index
    %c0_5 = arith.constant 0 : index
    %11 = vector.load %arg4[%c0_4, %c0_5] : memref<128x128xf32, #tpu.memory_space<vmem>>, vector<128x128xf32>
    %cst = arith.constant dense<0.000000e+00> : vector<8x128xf32>
    %12 = tpu.matmul %10, %11, %cst {dimension_numbers = #tpu.dot_dimension_numbers<[1], [0], [0], [1], [0, 0, 1, 1], [], []>, precision = #tpu.contract_precision<fp32>} : vector<8x128xf32>, vector<128x128xf32>, vector<8x128xf32> -> vector<8x128xf32>
    %13 = arith.subf %3, %12 : vector<8x128xf32>
    %14 = math.exp %13 : vector<8x128xf32>
    %c0_6 = arith.constant 0 : index
    %c0_7 = arith.constant 0 : index
    %15 = vector.load %arg5[%c0_6, %c0_7] : memref<128x32xf32, #tpu.memory_space<vmem>>, vector<128x32xf32>
    %cst_8 = arith.constant dense<0.000000e+00> : vector<8x32xf32>
    %16 = tpu.matmul %14, %15, %cst_8 {dimension_numbers = #tpu.dot_dimension_numbers<[1], [0], [0], [1], [0, 0, 1, 1], [], []>, precision = #tpu.contract_precision<fp32>} : vector<8x128xf32>, vector<128x32xf32>, vector<8x32xf32> -> vector<8x32xf32>
    %cst_9 = arith.constant 0.000000e+00 : f32
    %17 = vector.broadcast %cst_9 : f32 to vector<8x128xf32>
    %18 = arith.select %6, %13, %17 : vector<8x128xi1>, vector<8x128xf32>
    %c0_10 = arith.constant 0 : index
    %c0_11 = arith.constant 0 : index
    %19 = vector.load %arg5[%c0_10, %c0_11] : memref<128x32xf32, #tpu.memory_space<vmem>>, vector<128x32xf32>
    %cst_12 = arith.constant dense<0.000000e+00> : vector<8x32xf32>
    %20 = tpu.matmul %18, %19, %cst_12 {dimension_numbers = #tpu.dot_dimension_numbers<[1], [0], [0], [1], [0, 0, 1, 1], [], []>, precision = #tpu.contract_precision<fp32>} : vector<8x128xf32>, vector<128x32xf32>, vector<8x32xf32> -> vector<8x32xf32>
    %21 = arith.extui %6 : vector<8x128xi1> to vector<8x128xi32>
    %22 = arith.sitofp %21 : vector<8x128xi32> to vector<8x128xf32>
    %c0_13 = arith.constant 0 : index
    %c0_14 = arith.constant 0 : index
    %23 = vector.load %arg6[%c0_13, %c0_14] : memref<128x32xf32, #tpu.memory_space<vmem>>, vector<128x32xf32>
    %cst_15 = arith.constant dense<0.000000e+00> : vector<8x32xf32>
    %24 = tpu.matmul %22, %23, %cst_15 {dimension_numbers = #tpu.dot_dimension_numbers<[1], [0], [0], [1], [0, 0, 1, 1], [], []>, precision = #tpu.contract_precision<fp32>} : vector<8x128xf32>, vector<128x32xf32>, vector<8x32xf32> -> vector<8x32xf32>
    %25 = math.log %16 : vector<8x32xf32>
    %26 = arith.subf %20, %25 : vector<8x32xf32>
    %27 = math.exp %26 : vector<8x32xf32>
    %cst_16 = arith.constant 1.000000e+00 : f32
    %28 = vector.broadcast %cst_16 : f32 to vector<8x32xf32>
    %29 = arith.subf %28, %27 : vector<8x32xf32>
    %30 = arith.mulf %29, %29 : vector<8x32xf32>
    %c0_17 = arith.constant 0 : index
    %c0_18 = arith.constant 0 : index
    %31 = vector.load %arg8[%c0_17, %c0_18] : memref<8x32xf32, #tpu.memory_space<vmem>>, vector<8x32xf32>
    %cst_19 = arith.constant 0.000000e+00 : f32
    %32 = vector.broadcast %cst_19 : f32 to vector<8x32xf32>
    %33 = arith.subf %32, %24 : vector<8x32xf32>
    %34 = arith.mulf %33, %30 : vector<8x32xf32>
    %35 = arith.mulf %34, %26 : vector<8x32xf32>
    %36 = arith.addf %31, %35 : vector<8x32xf32>
    %c0_20 = arith.constant 0 : index
    %c0_21 = arith.constant 0 : index
    %37 = vector.load %arg8[%c0_20, %c0_21] : memref<8x32xf32, #tpu.memory_space<vmem>>, vector<8x32xf32>
    tpu.vector_store %arg8[%c0_20, %c0_21], %36 {strides = array<i32>} : memref<8x32xf32, #tpu.memory_space<vmem>>, vector<8x32xf32>,
    %c0_i32_22 = arith.constant 0 : i32
    %38 = arith.cmpi eq, %arg1, %c0_i32_22 : i32
    %39 = arith.extui %38 : i1 to i32
    %c0_i32_23 = arith.constant 0 : i32
    %40 = arith.cmpi ne, %39, %c0_i32_23 : i32
    scf.if %40 {
      %c0_24 = arith.constant 0 : index
      %c0_25 = arith.constant 0 : index
      %41 = vector.load %arg8[%c0_24, %c0_25] : memref<8x32xf32, #tpu.memory_space<vmem>>, vector<8x32xf32>
      %42 = vector.shape_cast %41 : vector<8x32xf32> to vector<1x8x32xf32>
      %cst_26 = arith.constant dense<0.000000e+00> : vector<1xf32>
      %43 = vector.multi_reduction <add>, %42, %cst_26 [1, 2] : vector<1x8x32xf32> to vector<1xf32>
      %44 = vector.shape_cast %43 : vector<1xf32> to vector<1x1x1xf32>
      %45 = vector.extract %44[0, 0, 0] : f32 from vector<1x1x1xf32>
      %cst_27 = arith.constant 0.000000e+00 : f32
      %46 = vector.broadcast %cst_27 : f32 to vector<1x8x128xf32>
      %47 = vector.broadcast %45 : f32 to vector<1x8x128xf32>
      %48 = arith.addf %47, %46 : vector<1x8x128xf32>
      %c0_28 = arith.constant 0 : index
      %c0_29 = arith.constant 0 : index
      %c0_30 = arith.constant 0 : index
      %49 = vector.load %arg7[%c0_28, %c0_29, %c0_30] : memref<1x8x128xf32, #tpu.memory_space<vmem>>, vector<1x8x128xf32>
      tpu.vector_store %arg7[%c0_28, %c0_29, %c0_30], %48 {strides = array<i32>} : memref<1x8x128xf32, #tpu.memory_space<vmem>>, vector<1x8x128xf32>,
    } else {
    }
    return
  }
  func.func @transform_0(%arg0: i32, %arg1: i32) -> (i32, i32) {
    %c1_i32 = arith.constant 1 : i32
    %0 = arith.muli %arg0, %c1_i32 : i32
    %1 = arith.addi %0, %arg1 : i32
    %c0_i32 = arith.constant 0 : i32
    %c0_i32_0 = arith.constant 0 : i32
    return %1, %c0_i32 : i32, i32
  }
  func.func @transform_1(%arg0: i32, %arg1: i32) -> (i32, i32) {
    %c1_i32 = arith.constant 1 : i32
    %0 = arith.muli %arg0, %c1_i32 : i32
    %1 = arith.addi %0, %arg1 : i32
    %c0_i32 = arith.constant 0 : i32
    %c0_i32_0 = arith.constant 0 : i32
    return %1, %c0_i32 : i32, i32
  }
  func.func @transform_2(%arg0: i32, %arg1: i32) -> (i32, i32) {
    %c0_i32 = arith.constant 0 : i32
    %c0_i32_0 = arith.constant 0 : i32
    %c0_i32_1 = arith.constant 0 : i32
    return %c0_i32, %c0_i32_0 : i32, i32
  }
  func.func @transform_3(%arg0: i32, %arg1: i32) -> (i32, i32) {
    %c0_i32 = arith.constant 0 : i32
    %c0_i32_0 = arith.constant 0 : i32
    %c0_i32_1 = arith.constant 0 : i32
    return %c0_i32, %c0_i32_0 : i32, i32
  }
  func.func @transform_4(%arg0: i32, %arg1: i32) -> (i32, i32) {
    %c0_i32 = arith.constant 0 : i32
    %c0_i32_0 = arith.constant 0 : i32
    %c0_i32_1 = arith.constant 0 : i32
    return %c0_i32, %c0_i32_0 : i32, i32
  }
  func.func @transform_5(%arg0: i32, %arg1: i32) -> (i32, i32, i32) {
    %c0_i32 = arith.constant 0 : i32
    %c0_i32_0 = arith.constant 0 : i32
    %c0_i32_1 = arith.constant 0 : i32
    return %arg0, %c0_i32, %c0_i32_0 : i32, i32, i32
  }
}

</mosaic_0001>

<llo_original>
// kernel: tpu_custom_call.1
$region0: #{tpu_custom_call.1}
  #allocation0 [shape = 'u32[]', space=smem, size = 0x4, offset = 0x4, fixed_abs, tag = 'smem constant byte address 0x4 - core index']
  #allocation1 [shape = 'u32[144,128]{1,0:T(1,128)}', space=vmem, size = 0x12000, scoped, tag = 'internal scratch']
  #allocation2 [shape = 'f32[8,32]{1,0:T(8,128)}', space=vmem, size = 0x1000, scoped, tag = 'scratch operand']
  %s0 = inlined_call_operand.vmem [shape: f32[8,128], index: 0, kind: input, shape index: {}]
  %s1 = inlined_call_operand.vmem [shape: s32[8,128], index: 1, kind: input, shape index: {}]
  %s2 = inlined_call_operand.vmem [shape: f32[128,128], index: 2, kind: input, shape index: {}]
  %s3 = inlined_call_operand.vmem [shape: f32[128,32], index: 3, kind: input, shape index: {}]
  %s4 = inlined_call_operand.vmem [shape: f32[128,32], index: 4, kind: input, shape index: {}]
  %s5 = inlined_call_operand.hbm [shape: f32[1,8,128], index: 5, kind: output, shape index: {}]
  %s6 = sld [smem:[#allocation0]]
  $region38: #{tpu_custom_call.1} parent=0
    _
  %s8 = ssub.s32 1, %s6
  %s9 = scalar_select 0, %s8, %s6
  $region1: #{tpu_custom_call.1} parent=0
    #allocation3 [shape = 'u8[4096]{0}', space=vmem, size = 0x1000, scoped, tag = 'output window, operand 0, single buffered']
    #allocation4 [shape = 's32[1]{0}', space=sflag, size = 0x4, scoped, tag = 'scoped memory for tpu_custom_call.1']
    %10 = vsyncpa [#allocation4], 0
    // Predicated region
    $region2: #{tpu_custom_call.1} parent=1 // pred_check
      _
    $region3: #{tpu_custom_call.1} parent=1 // pred_check_branch
      %12 = sbr.rel (0) target = $region5
    $region4: #{tpu_custom_call.1} parent=1 // pred_region
      %s13 = sadd.s32 0, 0
      %p14 = scmp.lt.s32.totalorder %s13, 0
      %s15 = scalar_select %p14, %s13, 0
      %s16 = smul.addr %s15, 8
      %s17 = scalar_lea.vmem %s0, %s16
      %s18 = sadd.s32 0, 0
    $region5: #{tpu_custom_call.1} parent=1 // pred_fallthru
      _
    // Predicated region
    $region6: #{tpu_custom_call.1} parent=1 // pred_check
      _
    $region7: #{tpu_custom_call.1} parent=1 // pred_check_branch
      %20 = sbr.rel (0) target = $region9
    $region8: #{tpu_custom_call.1} parent=1 // pred_region
      %s21 = sadd.s32 0, 0
      %p22 = scmp.lt.s32.totalorder %s21, 0
      %s23 = scalar_select %p22, %s21, 0
      %s24 = smul.addr %s23, 8
      %s25 = scalar_lea.vmem %s1, %s24
      %s26 = sadd.s32 0, 0
    $region9: #{tpu_custom_call.1} parent=1 // pred_fallthru
      _
    // Predicated region
    $region10: #{tpu_custom_call.1} parent=1 // pred_check
      _
    $region11: #{tpu_custom_call.1} parent=1 // pred_check_branch
      %28 = sbr.rel (0) target = $region13
    $region12: #{tpu_custom_call.1} parent=1 // pred_region
      _
    $region13: #{tpu_custom_call.1} parent=1 // pred_fallthru
      _
    // Predicated region
    $region14: #{tpu_custom_call.1} parent=1 // pred_check
      _
    $region15: #{tpu_custom_call.1} parent=1 // pred_check_branch
      %30 = sbr.rel (0) target = $region17
    $region16: #{tpu_custom_call.1} parent=1 // pred_region
      _
    $region17: #{tpu_custom_call.1} parent=1 // pred_fallthru
      _
    // Predicated region
    $region18: #{tpu_custom_call.1} parent=1 // pred_check
      _
    $region19: #{tpu_custom_call.1} parent=1 // pred_check_branch
      %32 = sbr.rel (0) target = $region21
    $region20: #{tpu_custom_call.1} parent=1 // pred_region
      _
    $region21: #{tpu_custom_call.1} parent=1 // pred_fallthru
      _
    %s33 = sadd.s32 0, 0
    %p34 = scmp.lt.s32.totalorder %s33, 0
    %s35 = scalar_select %p34, %s33, 0
    %s36 = smul.addr %s35, 8
    %s37 = scalar_lea.vmem %s0, %s36
    %s38 = sadd.s32 0, 0
    %p39 = scmp.lt.s32.totalorder %s38, 0
    %s40 = scalar_select %p39, %s38, 0
    %s41 = smul.addr %s40, 8
    %s42 = scalar_lea.vmem %s1, %s41
    %s43 = sadd.s32 0, 0
    %p44 = scmp.lt.s32.totalorder %s43, 0
    %s45 = scalar_select %p44, %s43, 0
    %s46 = smul.addr %s45, 8
    %s47 = scalar_lea.vmem %s0, %s46
    %s48 = sadd.s32 0, 0
    %s49 = sadd.s32 0, 0
    %p50 = scmp.lt.s32.totalorder %s49, 0
    %s51 = scalar_select %p50, %s49, 0
    %s52 = smul.addr %s51, 8
    %s53 = scalar_lea.vmem %s1, %s52
    %s54 = sadd.s32 0, 0
    %p55 = scmp.eq.s32.totalorder 0, 0
    // Predicated region
    $region22: #{tpu_custom_call.1} parent=1 // pred_check
      %p56 = pneg %p55
    $region23: #{tpu_custom_call.1} parent=1 // pred_check_branch
      %58 = sbr.rel (%p56) target = $region25
    $region24: #{tpu_custom_call.1} parent=1 // pred_region
      %vm59 = vcmask 261120
      %60 = vst.msk [vmem:[#allocation2] sm:$0xff] %vm59, 0.0
    $region25: #{tpu_custom_call.1} parent=1 // pred_fallthru
      _
    %v61 = vld [vmem:[%s47] sm:$0xff]
    %v62 = vld [vmem:[%s53] sm:$0xff]
    %v63 = vlaneseq
    %v64 = vand.u32 %v63, 127
    %vm65 = vcmp.eq.s32.totalorder %v64, %v62
    %66 = vrot.lane.b32.xlu0 %v61, 127
    %v67 = vpop.permute.xlu0 %66
    %v68 = vmax.f32 %v61, %v67
    %69 = vrot.lane.b32.xlu0 %v68, 126
    %v70 = vpop.permute.xlu0 %69
    %v71 = vmax.f32 %v68, %v70
    %v72 = vld [vmem:[%s2] sm:$0xff]
    %v73 = vld [vmem:[%s2 + $0x8] sm:$0xff]
    %v74 = vld [vmem:[%s2 + $0x10] sm:$0xff]
    %v75 = vld [vmem:[%s2 + $0x18] sm:$0xff]
    %v76 = vld [vmem:[%s2 + $0x20] sm:$0xff]
    %v77 = vld [vmem:[%s2 + $0x28] sm:$0xff]
    %v78 = vld [vmem:[%s2 + $0x30] sm:$0xff]
    %v79 = vld [vmem:[%s2 + $0x38] sm:$0xff]
    %v80 = vld [vmem:[%s2 + $0x40] sm:$0xff]
    %v81 = vld [vmem:[%s2 + $0x48] sm:$0xff]
    %v82 = vld [vmem:[%s2 + $0x50] sm:$0xff]
    %v83 = vld [vmem:[%s2 + $0x58] sm:$0xff]
    %v84 = vld [vmem:[%s2 + $0x60] sm:$0xff]
    %v85 = vld [vmem:[%s2 + $0x68] sm:$0xff]
    %v86 = vld [vmem:[%s2 + $0x70] sm:$0xff]
    %v87 = vld [vmem:[%s2 + $0x78] sm:$0xff]
    %88 = vmatprep.subr.mxu0 0.0
    %v89 = vand.u32 %v72, 4294901760
    %90 = vmatpush1.msra.mxu0 %v89
    %91 = vmatprep.subr.mxu0 0.0
    %v92 = vand.u32 %v73, 4294901760
    %93 = vmatpush1.msra.mxu0 %v92
    %94 = vmatprep.subr.mxu0 0.0
    %v95 = vand.u32 %v74, 4294901760
    %96 = vmatpush1.msra.mxu0 %v95
    %97 = vmatprep.subr.mxu0 0.0
    %v98 = vand.u32 %v75, 4294901760
    %99 = vmatpush1.msra.mxu0 %v98
    %100 = vmatprep.subr.mxu0 0.0
    %v101 = vand.u32 %v76, 4294901760
    %102 = vmatpush1.msra.mxu0 %v101
    %103 = vmatprep.subr.mxu0 0.0
    %v104 = vand.u32 %v77, 4294901760
    %105 = vmatpush1.msra.mxu0 %v104
    %106 = vmatprep.subr.mxu0 0.0
    %v107 = vand.u32 %v78, 4294901760
    %108 = vmatpush1.msra.mxu0 %v107
    %109 = vmatprep.subr.mxu0 0.0
    %v110 = vand.u32 %v79, 4294901760
    %111 = vmatpush1.msra.mxu0 %v110
    %112 = vmatprep.subr.mxu0 0.0
    %v113 = vand.u32 %v80, 4294901760
    %114 = vmatpush1.msra.mxu0 %v113
    %115 = vmatprep.subr.mxu0 0.0
    %v116 = vand.u32 %v81, 4294901760
    %117 = vmatpush1.msra.mxu0 %v116
    %118 = vmatprep.subr.mxu0 0.0
    %v119 = vand.u32 %v82, 4294901760
    %120 = vmatpush1.msra.mxu0 %v119
    %121 = vmatprep.subr.mxu0 0.0
    %v122 = vand.u32 %v83, 4294901760
    %123 = vmatpush1.msra.mxu0 %v122
    %124 = vmatprep.subr.mxu0 0.0
    %v125 = vand.u32 %v84, 4294901760
    %126 = vmatpush1.msra.mxu0 %v125
    %127 = vmatprep.subr.mxu0 0.0
    %v128 = vand.u32 %v85, 4294901760
    %129 = vmatpush1.msra.mxu0 %v128
    %130 = vmatprep.subr.mxu0 0.0
    %v131 = vand.u32 %v86, 4294901760
    %132 = vmatpush1.msra.mxu0 %v131
    %133 = vmatprep.subr.mxu0 0.0
    %v134 = vand.u32 %v87, 4294901760
    %135 = vmatpush1.msra.mxu0 %v134
    %136 = vmatprep.subr.mxu0 0.0
    %137 = vmatpush1.msra.mxu0 0.0
    %138 = vmatprep.subr.mxu0 0.0
    %139 = vmatpush1.msra.mxu0 0.0
    %140 = vmatprep.subr.mxu0 0.0
    %141 = vmatpush1.msra.mxu0 0.0
    %142 = vmatprep.subr.mxu0 0.0
    %143 = vmatpush1.msra.mxu0 0.0
    %144 = vmatprep.subr.mxu0 0.0
    %145 = vmatpush1.msra.mxu0 0.0
    %146 = vmatprep.subr.mxu0 0.0
    %147 = vmatpush1.msra.mxu0 0.0
    %148 = vmatprep.subr.mxu0 0.0
    %149 = vmatpush1.msra.mxu0 0.0
    %150 = vmatprep.subr.mxu0 0.0
    %151 = vmatpush1.msra.mxu0 0.0
    %152 = vmatprep.subr.mxu0 0.0
    %153 = vmatpush1.msra.mxu0 0.0
    %154 = vmatprep.subr.mxu0 0.0
    %155 = vmatpush1.msra.mxu0 0.0
    %156 = vmatprep.subr.mxu0 0.0
    %157 = vmatpush1.msra.mxu0 0.0
    %158 = vmatprep.subr.mxu0 0.0
    %159 = vmatpush1.msra.mxu0 0.0
    %160 = vmatprep.subr.mxu0 0.0
    %161 = vmatpush1.msra.mxu0 0.0
    %162 = vmatprep.subr.mxu0 0.0
    %163 = vmatpush1.msra.mxu0 0.0
    %164 = vmatprep.subr.mxu0 0.0
    %165 = vmatpush1.msra.mxu0 0.0
    %166 = vmatprep.subr.mxu0 0.0
    %167 = vmatpush1.msra.mxu0 0.0
    %168 = vmatprep.mubr.f32.mxu0 0.0
    %v169 = vand.u32 %v71, 4294901760
    %v170 = vsub.f32 %v71, %v169
    %v171 = vand.u32 %v170, 4294901760
    %v172 = vsub.f32 %v170, %v171
    %v173 = vand.u32 %v172, 4294901760
    %174 = vmatmul.mubr.f32.gmra.mrb[0].mxu0 %v173
    %v175 = vpop.f32.mrb[0].mxu0
    %v176 = vadd.f32 0.0, %v175
    %v177 = vpop.f32.mrb[0].mxu0
    %178 = vdwg.mxu0
    %179 = vmatprep.subr.mxu0 0.0
    %v180 = vand.u32 %v72, 4294901760
    %v181 = vsub.f32 %v72, %v180
    %v182 = vand.u32 %v181, 4294901760
    %v183 = vsub.f32 %v181, %v182
    %v184 = vand.u32 %v183, 4294901760
    %185 = vmatpush1.msra.mxu0 %v184
    %186 = vmatprep.subr.mxu0 0.0
    %v187 = vand.u32 %v73, 4294901760
    %v188 = vsub.f32 %v73, %v187
    %v189 = vand.u32 %v188, 4294901760
    %v190 = vsub.f32 %v188, %v189
    %v191 = vand.u32 %v190, 4294901760
    %192 = vmatpush1.msra.mxu0 %v191
    %193 = vmatprep.subr.mxu0 0.0
    %v194 = vand.u32 %v74, 4294901760
    %v195 = vsub.f32 %v74, %v194
    %v196 = vand.u32 %v195, 4294901760
    %v197 = vsub.f32 %v195, %v196
    %v198 = vand.u32 %v197, 4294901760
    %199 = vmatpush1.msra.mxu0 %v198
    %200 = vmatprep.subr.mxu0 0.0
    %v201 = vand.u32 %v75, 4294901760
    %v202 = vsub.f32 %v75, %v201
    %v203 = vand.u32 %v202, 4294901760
    %v204 = vsub.f32 %v202, %v203
    %v205 = vand.u32 %v204, 4294901760
    %206 = vmatpush1.msra.mxu0 %v205
    %207 = vmatprep.subr.mxu0 0.0
    %v208 = vand.u32 %v76, 4294901760
    %v209 = vsub.f32 %v76, %v208
    %v210 = vand.u32 %v209, 4294901760
    %v211 = vsub.f32 %v209, %v210
    %v212 = vand.u32 %v211, 4294901760
    %213 = vmatpush1.msra.mxu0 %v212
    %214 = vmatprep.subr.mxu0 0.0
    %v215 = vand.u32 %v77, 4294901760
    %v216 = vsub.f32 %v77, %v215
    %v217 = vand.u32 %v216, 4294901760
    %v218 = vsub.f32 %v216, %v217
    %v219 = vand.u32 %v218, 4294901760
    %220 = vmatpush1.msra.mxu0 %v219
    %221 = vmatprep.subr.mxu0 0.0
    %v222 = vand.u32 %v78, 4294901760
    %v223 = vsub.f32 %v78, %v222
    %v224 = vand.u32 %v223, 4294901760
    %v225 = vsub.f32 %v223, %v224
    %v226 = vand.u32 %v225, 4294901760
    %227 = vmatpush1.msra.mxu0 %v226
    %228 = vmatprep.subr.mxu0 0.0
    %v229 = vand.u32 %v79, 4294901760
    %v230 = vsub.f32 %v79, %v229
    %v231 = vand.u32 %v230, 4294901760
    %v232 = vsub.f32 %v230, %v231
    %v233 = vand.u32 %v232, 4294901760
    %234 = vmatpush1.msra.mxu0 %v233
    %235 = vmatprep.subr.mxu0 0.0
    %v236 = vand.u32 %v80, 4294901760
    %v237 = vsub.f32 %v80, %v236
    %v238 = vand.u32 %v237, 4294901760
    %v239 = vsub.f32 %v237, %v238
    %v240 = vand.u32 %v239, 4294901760
    %241 = vmatpush1.msra.mxu0 %v240
    %242 = vmatprep.subr.mxu0 0.0
    %v243 = vand.u32 %v81, 4294901760
    %v244 = vsub.f32 %v81, %v243
    %v245 = vand.u32 %v244, 4294901760
    %v246 = vsub.f32 %v244, %v245
    %v247 = vand.u32 %v246, 4294901760
    %248 = vmatpush1.msra.mxu0 %v247
    %249 = vmatprep.subr.mxu0 0.0
    %v250 = vand.u32 %v82, 4294901760
    %v251 = vsub.f32 %v82, %v250
    %v252 = vand.u32 %v251, 4294901760
    %v253 = vsub.f32 %v251, %v252
    %v254 = vand.u32 %v253, 4294901760
    %255 = vmatpush1.msra.mxu0 %v254
    %256 = vmatprep.subr.mxu0 0.0
    %v257 = vand.u32 %v83, 4294901760
    %v258 = vsub.f32 %v83, %v257
    %v259 = vand.u32 %v258, 4294901760
    %v260 = vsub.f32 %v258, %v259
    %v261 = vand.u32 %v260, 4294901760
    %262 = vmatpush1.msra.mxu0 %v261
    %263 = vmatprep.subr.mxu0 0.0
    %v264 = vand.u32 %v84, 4294901760
    %v265 = vsub.f32 %v84, %v264
    %v266 = vand.u32 %v265, 4294901760
    %v267 = vsub.f32 %v265, %v266
    %v268 = vand.u32 %v267, 4294901760
    %269 = vmatpush1.msra.mxu0 %v268
    %270 = vmatprep.subr.mxu0 0.0
    %v271 = vand.u32 %v85, 4294901760
    %v272 = vsub.f32 %v85, %v271
    %v273 = vand.u32 %v272, 4294901760
    %v274 = vsub.f32 %v272, %v273
    %v275 = vand.u32 %v274, 4294901760
    %276 = vmatpush1.msra.mxu0 %v275
    %277 = vmatprep.subr.mxu0 0.0
    %v278 = vand.u32 %v86, 4294901760
    %v279 = vsub.f32 %v86, %v278
    %v280 = vand.u32 %v279, 4294901760
    %v281 = vsub.f32 %v279, %v280
    %v282 = vand.u32 %v281, 4294901760
    %283 = vmatpush1.msra.mxu0 %v282
    %284 = vmatprep.subr.mxu0 0.0
    %v285 = vand.u32 %v87, 4294901760
    %v286 = vsub.f32 %v87, %v285
    %v287 = vand.u32 %v286, 4294901760
    %v288 = vsub.f32 %v286, %v287
    %v289 = vand.u32 %v288, 4294901760
    %290 = vmatpush1.msra.mxu0 %v289
    %291 = vmatprep.subr.mxu0 0.0
    %292 = vmatpush1.msra.mxu0 0.0
    %293 = vmatprep.subr.mxu0 0.0
    %294 = vmatpush1.msra.mxu0 0.0
    %295 = vmatprep.subr.mxu0 0.0
    %296 = vmatpush1.msra.mxu0 0.0
    %297 = vmatprep.subr.mxu0 0.0
    %298 = vmatpush1.msra.mxu0 0.0
    %299 = vmatprep.subr.mxu0 0.0
    %300 = vmatpush1.msra.mxu0 0.0
    %301 = vmatprep.subr.mxu0 0.0
    %302 = vmatpush1.msra.mxu0 0.0
    %303 = vmatprep.subr.mxu0 0.0
    %304 = vmatpush1.msra.mxu0 0.0
    %305 = vmatprep.subr.mxu0 0.0
    %306 = vmatpush1.msra.mxu0 0.0
    %307 = vmatprep.subr.mxu0 0.0
    %308 = vmatpush1.msra.mxu0 0.0
    %309 = vmatprep.subr.mxu0 0.0
    %310 = vmatpush1.msra.mxu0 0.0
    %311 = vmatprep.subr.mxu0 0.0
    %312 = vmatpush1.msra.mxu0 0.0
    %313 = vmatprep.subr.mxu0 0.0
    %314 = vmatpush1.msra.mxu0 0.0
    %315 = vmatprep.subr.mxu0 0.0
    %316 = vmatpush1.msra.mxu0 0.0
    %317 = vmatprep.subr.mxu0 0.0
    %318 = vmatpush1.msra.mxu0 0.0
    %319 = vmatprep.subr.mxu0 0.0
    %320 = vmatpush1.msra.mxu0 0.0
    %321 = vmatprep.subr.mxu0 0.0
    %322 = vmatpush1.msra.mxu0 0.0
    %323 = vmatprep.mubr.f32.mxu0 0.0
    %v324 = vand.u32 %v71, 4294901760
    %325 = vmatmul.mubr.f32.gmra.mrb[0].mxu0 %v324
    %v326 = vpop.f32.mrb[0].mxu0
    %v327 = vadd.f32 %v176, %v326
    %v328 = vpop.f32.mrb[0].mxu0
    %329 = vdwg.mxu0
    %330 = vmatprep.subr.mxu0 0.0
    %v331 = vand.u32 %v72, 4294901760
    %v332 = vsub.f32 %v72, %v331
    %333 = vmatpush1.msra.mxu0 %v332
    %334 = vmatprep.subr.mxu0 0.0
    %v335 = vand.u32 %v73, 4294901760
    %v336 = vsub.f32 %v73, %v335
    %337 = vmatpush1.msra.mxu0 %v336
    %338 = vmatprep.subr.mxu0 0.0
    %v339 = vand.u32 %v74, 4294901760
    %v340 = vsub.f32 %v74, %v339
    %341 = vmatpush1.msra.mxu0 %v340
    %342 = vmatprep.subr.mxu0 0.0
    %v343 = vand.u32 %v75, 4294901760
    %v344 = vsub.f32 %v75, %v343
    %345 = vmatpush1.msra.mxu0 %v344
    %346 = vmatprep.subr.mxu0 0.0
    %v347 = vand.u32 %v76, 4294901760
    %v348 = vsub.f32 %v76, %v347
    %349 = vmatpush1.msra.mxu0 %v348
    %350 = vmatprep.subr.mxu0 0.0
    %v351 = vand.u32 %v77, 4294901760
    %v352 = vsub.f32 %v77, %v351
    %353 = vmatpush1.msra.mxu0 %v352
    %354 = vmatprep.subr.mxu0 0.0
    %v355 = vand.u32 %v78, 4294901760
    %v356 = vsub.f32 %v78, %v355
    %357 = vmatpush1.msra.mxu0 %v356
    %358 = vmatprep.subr.mxu0 0.0
    %v359 = vand.u32 %v79, 4294901760
    %v360 = vsub.f32 %v79, %v359
    %361 = vmatpush1.msra.mxu0 %v360
    %362 = vmatprep.subr.mxu0 0.0
    %v363 = vand.u32 %v80, 4294901760
    %v364 = vsub.f32 %v80, %v363
    %365 = vmatpush1.msra.mxu0 %v364
    %366 = vmatprep.subr.mxu0 0.0
    %v367 = vand.u32 %v81, 4294901760
    %v368 = vsub.f32 %v81, %v367
    %369 = vmatpush1.msra.mxu0 %v368
    %370 = vmatprep.subr.mxu0 0.0
    %v371 = vand.u32 %v82, 4294901760
    %v372 = vsub.f32 %v82, %v371
    %373 = vmatpush1.msra.mxu0 %v372
    %374 = vmatprep.subr.mxu0 0.0
    %v375 = vand.u32 %v83, 4294901760
    %v376 = vsub.f32 %v83, %v375
    %377 = vmatpush1.msra.mxu0 %v376
    %378 = vmatprep.subr.mxu0 0.0
    %v379 = vand.u32 %v84, 4294901760
    %v380 = vsub.f32 %v84, %v379
    %381 = vmatpush1.msra.mxu0 %v380
    %382 = vmatprep.subr.mxu0 0.0
    %v383 = vand.u32 %v85, 4294901760
    %v384 = vsub.f32 %v85, %v383
    %385 = vmatpush1.msra.mxu0 %v384
    %386 = vmatprep.subr.mxu0 0.0
    %v387 = vand.u32 %v86, 4294901760
    %v388 = vsub.f32 %v86, %v387
    %389 = vmatpush1.msra.mxu0 %v388
    %390 = vmatprep.subr.mxu0 0.0
    %v391 = vand.u32 %v87, 4294901760
    %v392 = vsub.f32 %v87, %v391
    %393 = vmatpush1.msra.mxu0 %v392
    %394 = vmatprep.subr.mxu0 0.0
    %395 = vmatpush1.msra.mxu0 0.0
    %396 = vmatprep.subr.mxu0 0.0
    %397 = vmatpush1.msra.mxu0 0.0
    %398 = vmatprep.subr.mxu0 0.0
    %399 = vmatpush1.msra.mxu0 0.0
    %400 = vmatprep.subr.mxu0 0.0
    %401 = vmatpush1.msra.mxu0 0.0
    %402 = vmatprep.subr.mxu0 0.0
    %403 = vmatpush1.msra.mxu0 0.0
    %404 = vmatprep.subr.mxu0 0.0
    %405 = vmatpush1.msra.mxu0 0.0
    %406 = vmatprep.subr.mxu0 0.0
    %407 = vmatpush1.msra.mxu0 0.0
    %408 = vmatprep.subr.mxu0 0.0
    %409 = vmatpush1.msra.mxu0 0.0
    %410 = vmatprep.subr.mxu0 0.0
    %411 = vmatpush1.msra.mxu0 0.0
    %412 = vmatprep.subr.mxu0 0.0
    %413 = vmatpush1.msra.mxu0 0.0
    %414 = vmatprep.subr.mxu0 0.0
    %415 = vmatpush1.msra.mxu0 0.0
    %416 = vmatprep.subr.mxu0 0.0
    %417 = vmatpush1.msra.mxu0 0.0
    %418 = vmatprep.subr.mxu0 0.0
    %419 = vmatpush1.msra.mxu0 0.0
    %420 = vmatprep.subr.mxu0 0.0
    %421 = vmatpush1.msra.mxu0 0.0
    %422 = vmatprep.subr.mxu0 0.0
    %423 = vmatpush1.msra.mxu0 0.0
    %424 = vmatprep.subr.mxu0 0.0
    %425 = vmatpush1.msra.mxu0 0.0
    %426 = vmatprep.mubr.f32.mxu0 0.0
    %v427 = vand.u32 %v71, 4294901760
    %v428 = vsub.f32 %v71, %v427
    %429 = vmatmul.mubr.f32.gmra.mrb[0].mxu0 %v428
    %v430 = vpop.f32.mrb[0].mxu0
    %v431 = vadd.f32 %v327, %v430
    %v432 = vpop.f32.mrb[0].mxu0
    %433 = vdwg.mxu0
    %434 = vmatprep.subr.mxu0 0.0
    %v435 = vand.u32 %v72, 4294901760
    %436 = vmatpush1.msra.mxu0 %v435
    %437 = vmatprep.subr.mxu0 0.0
    %v438 = vand.u32 %v73, 4294901760
    %439 = vmatpush1.msra.mxu0 %v438
    %440 = vmatprep.subr.mxu0 0.0
    %v441 = vand.u32 %v74, 4294901760
    %442 = vmatpush1.msra.mxu0 %v441
    %443 = vmatprep.subr.mxu0 0.0
    %v444 = vand.u32 %v75, 4294901760
    %445 = vmatpush1.msra.mxu0 %v444
    %446 = vmatprep.subr.mxu0 0.0
    %v447 = vand.u32 %v76, 4294901760
    %448 = vmatpush1.msra.mxu0 %v447
    %449 = vmatprep.subr.mxu0 0.0
    %v450 = vand.u32 %v77, 4294901760
    %451 = vmatpush1.msra.mxu0 %v450
    %452 = vmatprep.subr.mxu0 0.0
    %v453 = vand.u32 %v78, 4294901760
    %454 = vmatpush1.msra.mxu0 %v453
    %455 = vmatprep.subr.mxu0 0.0
    %v456 = vand.u32 %v79, 4294901760
    %457 = vmatpush1.msra.mxu0 %v456
    %458 = vmatprep.subr.mxu0 0.0
    %v459 = vand.u32 %v80, 4294901760
    %460 = vmatpush1.msra.mxu0 %v459
    %461 = vmatprep.subr.mxu0 0.0
    %v462 = vand.u32 %v81, 4294901760
    %463 = vmatpush1.msra.mxu0 %v462
    %464 = vmatprep.subr.mxu0 0.0
    %v465 = vand.u32 %v82, 4294901760
    %466 = vmatpush1.msra.mxu0 %v465
    %467 = vmatprep.subr.mxu0 0.0
    %v468 = vand.u32 %v83, 4294901760
    %469 = vmatpush1.msra.mxu0 %v468
    %470 = vmatprep.subr.mxu0 0.0
    %v471 = vand.u32 %v84, 4294901760
    %472 = vmatpush1.msra.mxu0 %v471
    %473 = vmatprep.subr.mxu0 0.0
    %v474 = vand.u32 %v85, 4294901760
    %475 = vmatpush1.msra.mxu0 %v474
    %476 = vmatprep.subr.mxu0 0.0
    %v477 = vand.u32 %v86, 4294901760
    %478 = vmatpush1.msra.mxu0 %v477
    %479 = vmatprep.subr.mxu0 0.0
    %v480 = vand.u32 %v87, 4294901760
    %481 = vmatpush1.msra.mxu0 %v480
    %482 = vmatprep.subr.mxu0 0.0
    %483 = vmatpush1.msra.mxu0 0.0
    %484 = vmatprep.subr.mxu0 0.0
    %485 = vmatpush1.msra.mxu0 0.0
    %486 = vmatprep.subr.mxu0 0.0
    %487 = vmatpush1.msra.mxu0 0.0
    %488 = vmatprep.subr.mxu0 0.0
    %489 = vmatpush1.msra.mxu0 0.0
    %490 = vmatprep.subr.mxu0 0.0
    %491 = vmatpush1.msra.mxu0 0.0
    %492 = vmatprep.subr.mxu0 0.0
    %493 = vmatpush1.msra.mxu0 0.0
    %494 = vmatprep.subr.mxu0 0.0
    %495 = vmatpush1.msra.mxu0 0.0
    %496 = vmatprep.subr.mxu0 0.0
    %497 = vmatpush1.msra.mxu0 0.0
    %498 = vmatprep.subr.mxu0 0.0
    %499 = vmatpush1.msra.mxu0 0.0
    %500 = vmatprep.subr.mxu0 0.0
    %501 = vmatpush1.msra.mxu0 0.0
    %502 = vmatprep.subr.mxu0 0.0
    %503 = vmatpush1.msra.mxu0 0.0
    %504 = vmatprep.subr.mxu0 0.0
    %505 = vmatpush1.msra.mxu0 0.0
    %506 = vmatprep.subr.mxu0 0.0
    %507 = vmatpush1.msra.mxu0 0.0
    %508 = vmatprep.subr.mxu0 0.0
    %509 = vmatpush1.msra.mxu0 0.0
    %510 = vmatprep.subr.mxu0 0.0
    %511 = vmatpush1.msra.mxu0 0.0
    %512 = vmatprep.subr.mxu0 0.0
    %513 = vmatpush1.msra.mxu0 0.0
    %514 = vmatprep.mubr.f32.mxu0 0.0
    %v515 = vand.u32 %v71, 4294901760
    %v516 = vsub.f32 %v71, %v515
    %v517 = vand.u32 %v516, 4294901760
    %518 = vmatmul.mubr.f32.gmra.mrb[0].mxu0 %v517
    %v519 = vpop.f32.mrb[0].mxu0
    %v520 = vadd.f32 %v431, %v519
    %v521 = vpop.f32.mrb[0].mxu0
    %522 = vdwg.mxu0
    %523 = vmatprep.subr.mxu0 0.0
    %v524 = vand.u32 %v72, 4294901760
    %v525 = vsub.f32 %v72, %v524
    %v526 = vand.u32 %v525, 4294901760
    %527 = vmatpush1.msra.mxu0 %v526
    %528 = vmatprep.subr.mxu0 0.0
    %v529 = vand.u32 %v73, 4294901760
    %v530 = vsub.f32 %v73, %v529
    %v531 = vand.u32 %v530, 4294901760
    %532 = vmatpush1.msra.mxu0 %v531
    %533 = vmatprep.subr.mxu0 0.0
    %v534 = vand.u32 %v74, 4294901760
    %v535 = vsub.f32 %v74, %v534
    %v536 = vand.u32 %v535, 4294901760
    %537 = vmatpush1.msra.mxu0 %v536
    %538 = vmatprep.subr.mxu0 0.0
    %v539 = vand.u32 %v75, 4294901760
    %v540 = vsub.f32 %v75, %v539
    %v541 = vand.u32 %v540, 4294901760
    %542 = vmatpush1.msra.mxu0 %v541
    %543 = vmatprep.subr.mxu0 0.0
    %v544 = vand.u32 %v76, 4294901760
    %v545 = vsub.f32 %v76, %v544
    %v546 = vand.u32 %v545, 4294901760
    %547 = vmatpush1.msra.mxu0 %v546
    %548 = vmatprep.subr.mxu0 0.0
    %v549 = vand.u32 %v77, 4294901760
    %v550 = vsub.f32 %v77, %v549
    %v551 = vand.u32 %v550, 4294901760
    %552 = vmatpush1.msra.mxu0 %v551
    %553 = vmatprep.subr.mxu0 0.0
    %v554 = vand.u32 %v78, 4294901760
    %v555 = vsub.f32 %v78, %v554
    %v556 = vand.u32 %v555, 4294901760
    %557 = vmatpush1.msra.mxu0 %v556
    %558 = vmatprep.subr.mxu0 0.0
    %v559 = vand.u32 %v79, 4294901760
    %v560 = vsub.f32 %v79, %v559
    %v561 = vand.u32 %v560, 4294901760
    %562 = vmatpush1.msra.mxu0 %v561
    %563 = vmatprep.subr.mxu0 0.0
    %v564 = vand.u32 %v80, 4294901760
    %v565 = vsub.f32 %v80, %v564
    %v566 = vand.u32 %v565, 4294901760
    %567 = vmatpush1.msra.mxu0 %v566
    %568 = vmatprep.subr.mxu0 0.0
    %v569 = vand.u32 %v81, 4294901760
    %v570 = vsub.f32 %v81, %v569
    %v571 = vand.u32 %v570, 4294901760
    %572 = vmatpush1.msra.mxu0 %v571
    %573 = vmatprep.subr.mxu0 0.0
    %v574 = vand.u32 %v82, 4294901760
    %v575 = vsub.f32 %v82, %v574
    %v576 = vand.u32 %v575, 4294901760
    %577 = vmatpush1.msra.mxu0 %v576
    %578 = vmatprep.subr.mxu0 0.0
    %v579 = vand.u32 %v83, 4294901760
    %v580 = vsub.f32 %v83, %v579
    %v581 = vand.u32 %v580, 4294901760
    %582 = vmatpush1.msra.mxu0 %v581
    %583 = vmatprep.subr.mxu0 0.0
    %v584 = vand.u32 %v84, 4294901760
    %v585 = vsub.f32 %v84, %v584
    %v586 = vand.u32 %v585, 4294901760
    %587 = vmatpush1.msra.mxu0 %v586
    %588 = vmatprep.subr.mxu0 0.0
    %v589 = vand.u32 %v85, 4294901760
    %v590 = vsub.f32 %v85, %v589
    %v591 = vand.u32 %v590, 4294901760
    %592 = vmatpush1.msra.mxu0 %v591
    %593 = vmatprep.subr.mxu0 0.0
    %v594 = vand.u32 %v86, 4294901760
    %v595 = vsub.f32 %v86, %v594
    %v596 = vand.u32 %v595, 4294901760
    %597 = vmatpush1.msra.mxu0 %v596
    %598 = vmatprep.subr.mxu0 0.0
    %v599 = vand.u32 %v87, 4294901760
    %v600 = vsub.f32 %v87, %v599
    %v601 = vand.u32 %v600, 4294901760
    %602 = vmatpush1.msra.mxu0 %v601
    %603 = vmatprep.subr.mxu0 0.0
    %604 = vmatpush1.msra.mxu0 0.0
    %605 = vmatprep.subr.mxu0 0.0
    %606 = vmatpush1.msra.mxu0 0.0
    %607 = vmatprep.subr.mxu0 0.0
    %608 = vmatpush1.msra.mxu0 0.0
    %609 = vmatprep.subr.mxu0 0.0
    %610 = vmatpush1.msra.mxu0 0.0
    %611 = vmatprep.subr.mxu0 0.0
    %612 = vmatpush1.msra.mxu0 0.0
    %613 = vmatprep.subr.mxu0 0.0
    %614 = vmatpush1.msra.mxu0 0.0
    %615 = vmatprep.subr.mxu0 0.0
    %616 = vmatpush1.msra.mxu0 0.0
    %617 = vmatprep.subr.mxu0 0.0
    %618 = vmatpush1.msra.mxu0 0.0
    %619 = vmatprep.subr.mxu0 0.0
    %620 = vmatpush1.msra.mxu0 0.0
    %621 = vmatprep.subr.mxu0 0.0
    %622 = vmatpush1.msra.mxu0 0.0
    %623 = vmatprep.subr.mxu0 0.0
    %624 = vmatpush1.msra.mxu0 0.0
    %625 = vmatprep.subr.mxu0 0.0
    %626 = vmatpush1.msra.mxu0 0.0
    %627 = vmatprep.subr.mxu0 0.0
    %628 = vmatpush1.msra.mxu0 0.0
    %629 = vmatprep.subr.mxu0 0.0
    %630 = vmatpush1.msra.mxu0 0.0
    %631 = vmatprep.subr.mxu0 0.0
    %632 = vmatpush1.msra.mxu0 0.0
    %633 = vmatprep.subr.mxu0 0.0
    %634 = vmatpush1.msra.mxu0 0.0
    %635 = vmatprep.mubr.f32.mxu0 0.0
    %v636 = vand.u32 %v71, 4294901760
    %637 = vmatmul.mubr.f32.gmra.mrb[0].mxu0 %v636
    %v638 = vpop.f32.mrb[0].mxu0
    %v639 = vadd.f32 %v520, %v638
    %v640 = vpop.f32.mrb[0].mxu0
    %641 = vdwg.mxu0
    %642 = vmatprep.subr.mxu0 0.0
    %v643 = vand.u32 %v72, 4294901760
    %644 = vmatpush1.msra.mxu0 %v643
    %645 = vmatprep.subr.mxu0 0.0
    %v646 = vand.u32 %v73, 4294901760
    %647 = vmatpush1.msra.mxu0 %v646
    %648 = vmatprep.subr.mxu0 0.0
    %v649 = vand.u32 %v74, 4294901760
    %650 = vmatpush1.msra.mxu0 %v649
    %651 = vmatprep.subr.mxu0 0.0
    %v652 = vand.u32 %v75, 4294901760
    %653 = vmatpush1.msra.mxu0 %v652
    %654 = vmatprep.subr.mxu0 0.0
    %v655 = vand.u32 %v76, 4294901760
    %656 = vmatpush1.msra.mxu0 %v655
    %657 = vmatprep.subr.mxu0 0.0
    %v658 = vand.u32 %v77, 4294901760
    %659 = vmatpush1.msra.mxu0 %v658
    %660 = vmatprep.subr.mxu0 0.0
    %v661 = vand.u32 %v78, 4294901760
    %662 = vmatpush1.msra.mxu0 %v661
    %663 = vmatprep.subr.mxu0 0.0
    %v664 = vand.u32 %v79, 4294901760
    %665 = vmatpush1.msra.mxu0 %v664
    %666 = vmatprep.subr.mxu0 0.0
    %v667 = vand.u32 %v80, 4294901760
    %668 = vmatpush1.msra.mxu0 %v667
    %669 = vmatprep.subr.mxu0 0.0
    %v670 = vand.u32 %v81, 4294901760
    %671 = vmatpush1.msra.mxu0 %v670
    %672 = vmatprep.subr.mxu0 0.0
    %v673 = vand.u32 %v82, 4294901760
    %674 = vmatpush1.msra.mxu0 %v673
    %675 = vmatprep.subr.mxu0 0.0
    %v676 = vand.u32 %v83, 4294901760
    %677 = vmatpush1.msra.mxu0 %v676
    %678 = vmatprep.subr.mxu0 0.0
    %v679 = vand.u32 %v84, 4294901760
    %680 = vmatpush1.msra.mxu0 %v679
    %681 = vmatprep.subr.mxu0 0.0
    %v682 = vand.u32 %v85, 4294901760
    %683 = vmatpush1.msra.mxu0 %v682
    %684 = vmatprep.subr.mxu0 0.0
    %v685 = vand.u32 %v86, 4294901760
    %686 = vmatpush1.msra.mxu0 %v685
    %687 = vmatprep.subr.mxu0 0.0
    %v688 = vand.u32 %v87, 4294901760
    %689 = vmatpush1.msra.mxu0 %v688
    %690 = vmatprep.subr.mxu0 0.0
    %691 = vmatpush1.msra.mxu0 0.0
    %692 = vmatprep.subr.mxu0 0.0
    %693 = vmatpush1.msra.mxu0 0.0
    %694 = vmatprep.subr.mxu0 0.0
    %695 = vmatpush1.msra.mxu0 0.0
    %696 = vmatprep.subr.mxu0 0.0
    %697 = vmatpush1.msra.mxu0 0.0
    %698 = vmatprep.subr.mxu0 0.0
    %699 = vmatpush1.msra.mxu0 0.0
    %700 = vmatprep.subr.mxu0 0.0
    %701 = vmatpush1.msra.mxu0 0.0
    %702 = vmatprep.subr.mxu0 0.0
    %703 = vmatpush1.msra.mxu0 0.0
    %704 = vmatprep.subr.mxu0 0.0
    %705 = vmatpush1.msra.mxu0 0.0
    %706 = vmatprep.subr.mxu0 0.0
    %707 = vmatpush1.msra.mxu0 0.0
    %708 = vmatprep.subr.mxu0 0.0
    %709 = vmatpush1.msra.mxu0 0.0
    %710 = vmatprep.subr.mxu0 0.0
    %711 = vmatpush1.msra.mxu0 0.0
    %712 = vmatprep.subr.mxu0 0.0
    %713 = vmatpush1.msra.mxu0 0.0
    %714 = vmatprep.subr.mxu0 0.0
    %715 = vmatpush1.msra.mxu0 0.0
    %716 = vmatprep.subr.mxu0 0.0
    %717 = vmatpush1.msra.mxu0 0.0
    %718 = vmatprep.subr.mxu0 0.0
    %719 = vmatpush1.msra.mxu0 0.0
    %720 = vmatprep.subr.mxu0 0.0
    %721 = vmatpush1.msra.mxu0 0.0
    %722 = vmatprep.mubr.f32.mxu0 0.0
    %v723 = vand.u32 %v71, 4294901760
    %724 = vmatmul.mubr.f32.gmra.mrb[0].mxu0 %v723
    %v725 = vpop.f32.mrb[0].mxu0
    %v726 = vadd.f32 %v639, %v725
    %v727 = vpop.f32.mrb[0].mxu0
    %728 = vdwg.mxu0
    %v729 = vsub.f32 %v61, %v726
    %v730 = vmul.f32 %v729, 1.442695
    %v731 = vpow.pop %v730
    %v732 = vld [vmem:[%s3] sm:$0xff]
    %v733 = vld [vmem:[%s3 + $0x8] sm:$0xff]
    %v734 = vld [vmem:[%s3 + $0x10] sm:$0xff]
    %v735 = vld [vmem:[%s3 + $0x18] sm:$0xff]
    %v736 = vld [vmem:[%s3 + $0x20] sm:$0xff]
    %v737 = vld [vmem:[%s3 + $0x28] sm:$0xff]
    %v738 = vld [vmem:[%s3 + $0x30] sm:$0xff]
    %v739 = vld [vmem:[%s3 + $0x38] sm:$0xff]
    %v740 = vld [vmem:[%s3 + $0x40] sm:$0xff]
    %v741 = vld [vmem:[%s3 + $0x48] sm:$0xff]
    %v742 = vld [vmem:[%s3 + $0x50] sm:$0xff]
    %v743 = vld [vmem:[%s3 + $0x58] sm:$0xff]
    %v744 = vld [vmem:[%s3 + $0x60] sm:$0xff]
    %v745 = vld [vmem:[%s3 + $0x68] sm:$0xff]
    %v746 = vld [vmem:[%s3 + $0x70] sm:$0xff]
    %v747 = vld [vmem:[%s3 + $0x78] sm:$0xff]
    %748 = vmatprep.subr.mxu0 0.0
    %v749 = vand.u32 %v732, 4294901760
    %750 = vmatpush1.msra.mxu0 %v749
    %751 = vmatprep.subr.mxu0 0.0
    %v752 = vand.u32 %v733, 4294901760
    %753 = vmatpush1.msra.mxu0 %v752
    %754 = vmatprep.subr.mxu0 0.0
    %v755 = vand.u32 %v734, 4294901760
    %756 = vmatpush1.msra.mxu0 %v755
    %757 = vmatprep.subr.mxu0 0.0
    %v758 = vand.u32 %v735, 4294901760
    %759 = vmatpush1.msra.mxu0 %v758
    %760 = vmatprep.subr.mxu0 0.0
    %v761 = vand.u32 %v736, 4294901760
    %762 = vmatpush1.msra.mxu0 %v761
    %763 = vmatprep.subr.mxu0 0.0
    %v764 = vand.u32 %v737, 4294901760
    %765 = vmatpush1.msra.mxu0 %v764
    %766 = vmatprep.subr.mxu0 0.0
    %v767 = vand.u32 %v738, 4294901760
    %768 = vmatpush1.msra.mxu0 %v767
    %769 = vmatprep.subr.mxu0 0.0
    %v770 = vand.u32 %v739, 4294901760
    %771 = vmatpush1.msra.mxu0 %v770
    %772 = vmatprep.subr.mxu0 0.0
    %v773 = vand.u32 %v740, 4294901760
    %774 = vmatpush1.msra.mxu0 %v773
    %775 = vmatprep.subr.mxu0 0.0
    %v776 = vand.u32 %v741, 4294901760
    %777 = vmatpush1.msra.mxu0 %v776
    %778 = vmatprep.subr.mxu0 0.0
    %v779 = vand.u32 %v742, 4294901760
    %780 = vmatpush1.msra.mxu0 %v779
    %781 = vmatprep.subr.mxu0 0.0
    %v782 = vand.u32 %v743, 4294901760
    %783 = vmatpush1.msra.mxu0 %v782
    %784 = vmatprep.subr.mxu0 0.0
    %v785 = vand.u32 %v744, 4294901760
    %786 = vmatpush1.msra.mxu0 %v785
    %787 = vmatprep.subr.mxu0 0.0
    %v788 = vand.u32 %v745, 4294901760
    %789 = vmatpush1.msra.mxu0 %v788
    %790 = vmatprep.subr.mxu0 0.0
    %v791 = vand.u32 %v746, 4294901760
    %792 = vmatpush1.msra.mxu0 %v791
    %793 = vmatprep.subr.mxu0 0.0
    %v794 = vand.u32 %v747, 4294901760
    %795 = vmatpush1.msra.mxu0 %v794
    %796 = vmatprep.subr.mxu0 0.0
    %797 = vmatpush1.msra.mxu0 0.0
    %798 = vmatprep.subr.mxu0 0.0
    %799 = vmatpush1.msra.mxu0 0.0
    %800 = vmatprep.subr.mxu0 0.0
    %801 = vmatpush1.msra.mxu0 0.0
    %802 = vmatprep.subr.mxu0 0.0
    %803 = vmatpush1.msra.mxu0 0.0
    %804 = vmatprep.subr.mxu0 0.0
    %805 = vmatpush1.msra.mxu0 0.0
    %806 = vmatprep.subr.mxu0 0.0
    %807 = vmatpush1.msra.mxu0 0.0
    %808 = vmatprep.subr.mxu0 0.0
    %809 = vmatpush1.msra.mxu0 0.0
    %810 = vmatprep.subr.mxu0 0.0
    %811 = vmatpush1.msra.mxu0 0.0
    %812 = vmatprep.subr.mxu0 0.0
    %813 = vmatpush1.msra.mxu0 0.0
    %814 = vmatprep.subr.mxu0 0.0
    %815 = vmatpush1.msra.mxu0 0.0
    %816 = vmatprep.subr.mxu0 0.0
    %817 = vmatpush1.msra.mxu0 0.0
    %818 = vmatprep.subr.mxu0 0.0
    %819 = vmatpush1.msra.mxu0 0.0
    %820 = vmatprep.subr.mxu0 0.0
    %821 = vmatpush1.msra.mxu0 0.0
    %822 = vmatprep.subr.mxu0 0.0
    %823 = vmatpush1.msra.mxu0 0.0
    %824 = vmatprep.subr.mxu0 0.0
    %825 = vmatpush1.msra.mxu0 0.0
    %826 = vmatprep.subr.mxu0 0.0
    %827 = vmatpush1.msra.mxu0 0.0
    %828 = vmatprep.mubr.f32.mxu0 0.0
    %v829 = vand.u32 %v731, 4294901760
    %v830 = vsub.f32 %v731, %v829
    %v831 = vand.u32 %v830, 4294901760
    %v832 = vsub.f32 %v830, %v831
    %v833 = vand.u32 %v832, 4294901760
    %834 = vmatmul.mubr.f32.gmra.mrb[0].mxu0 %v833
    %v835 = vpop.f32.mrb[0].mxu0
    %v836 = vadd.f32 0.0, %v835
    %v837 = vpop.f32.mrb[0].mxu0
    %838 = vdwg.mxu0
    %839 = vmatprep.subr.mxu0 0.0
    %v840 = vand.u32 %v732, 4294901760
    %v841 = vsub.f32 %v732, %v840
    %v842 = vand.u32 %v841, 4294901760
    %v843 = vsub.f32 %v841, %v842
    %v844 = vand.u32 %v843, 4294901760
    %845 = vmatpush1.msra.mxu0 %v844
    %846 = vmatprep.subr.mxu0 0.0
    %v847 = vand.u32 %v733, 4294901760
    %v848 = vsub.f32 %v733, %v847
    %v849 = vand.u32 %v848, 4294901760
    %v850 = vsub.f32 %v848, %v849
    %v851 = vand.u32 %v850, 4294901760
    %852 = vmatpush1.msra.mxu0 %v851
    %853 = vmatprep.subr.mxu0 0.0
    %v854 = vand.u32 %v734, 4294901760
    %v855 = vsub.f32 %v734, %v854
    %v856 = vand.u32 %v855, 4294901760
    %v857 = vsub.f32 %v855, %v856
    %v858 = vand.u32 %v857, 4294901760
    %859 = vmatpush1.msra.mxu0 %v858
    %860 = vmatprep.subr.mxu0 0.0
    %v861 = vand.u32 %v735, 4294901760
    %v862 = vsub.f32 %v735, %v861
    %v863 = vand.u32 %v862, 4294901760
    %v864 = vsub.f32 %v862, %v863
    %v865 = vand.u32 %v864, 4294901760
    %866 = vmatpush1.msra.mxu0 %v865
    %867 = vmatprep.subr.mxu0 0.0
    %v868 = vand.u32 %v736, 4294901760
    %v869 = vsub.f32 %v736, %v868
    %v870 = vand.u32 %v869, 4294901760
    %v871 = vsub.f32 %v869, %v870
    %v872 = vand.u32 %v871, 4294901760
    %873 = vmatpush1.msra.mxu0 %v872
    %874 = vmatprep.subr.mxu0 0.0
    %v875 = vand.u32 %v737, 4294901760
    %v876 = vsub.f32 %v737, %v875
    %v877 = vand.u32 %v876, 4294901760
    %v878 = vsub.f32 %v876, %v877
    %v879 = vand.u32 %v878, 4294901760
    %880 = vmatpush1.msra.mxu0 %v879
    %881 = vmatprep.subr.mxu0 0.0
    %v882 = vand.u32 %v738, 4294901760
    %v883 = vsub.f32 %v738, %v882
    %v884 = vand.u32 %v883, 4294901760
    %v885 = vsub.f32 %v883, %v884
    %v886 = vand.u32 %v885, 4294901760
    %887 = vmatpush1.msra.mxu0 %v886
    %888 = vmatprep.subr.mxu0 0.0
    %v889 = vand.u32 %v739, 4294901760
    %v890 = vsub.f32 %v739, %v889
    %v891 = vand.u32 %v890, 4294901760
    %v892 = vsub.f32 %v890, %v891
    %v893 = vand.u32 %v892, 4294901760
    %894 = vmatpush1.msra.mxu0 %v893
    %895 = vmatprep.subr.mxu0 0.0
    %v896 = vand.u32 %v740, 4294901760
    %v897 = vsub.f32 %v740, %v896
    %v898 = vand.u32 %v897, 4294901760
    %v899 = vsub.f32 %v897, %v898
    %v900 = vand.u32 %v899, 4294901760
    %901 = vmatpush1.msra.mxu0 %v900
    %902 = vmatprep.subr.mxu0 0.0
    %v903 = vand.u32 %v741, 4294901760
    %v904 = vsub.f32 %v741, %v903
    %v905 = vand.u32 %v904, 4294901760
    %v906 = vsub.f32 %v904, %v905
    %v907 = vand.u32 %v906, 4294901760
    %908 = vmatpush1.msra.mxu0 %v907
    %909 = vmatprep.subr.mxu0 0.0
    %v910 = vand.u32 %v742, 4294901760
    %v911 = vsub.f32 %v742, %v910
    %v912 = vand.u32 %v911, 4294901760
    %v913 = vsub.f32 %v911, %v912
    %v914 = vand.u32 %v913, 4294901760
    %915 = vmatpush1.msra.mxu0 %v914
    %916 = vmatprep.subr.mxu0 0.0
    %v917 = vand.u32 %v743, 4294901760
    %v918 = vsub.f32 %v743, %v917
    %v919 = vand.u32 %v918, 4294901760
    %v920 = vsub.f32 %v918, %v919
    %v921 = vand.u32 %v920, 4294901760
    %922 = vmatpush1.msra.mxu0 %v921
    %923 = vmatprep.subr.mxu0 0.0
    %v924 = vand.u32 %v744, 4294901760
    %v925 = vsub.f32 %v744, %v924
    %v926 = vand.u32 %v925, 4294901760
    %v927 = vsub.f32 %v925, %v926
    %v928 = vand.u32 %v927, 4294901760
    %929 = vmatpush1.msra.mxu0 %v928
    %930 = vmatprep.subr.mxu0 0.0
    %v931 = vand.u32 %v745, 4294901760
    %v932 = vsub.f32 %v745, %v931
    %v933 = vand.u32 %v932, 4294901760
    %v934 = vsub.f32 %v932, %v933
    %v935 = vand.u32 %v934, 4294901760
    %936 = vmatpush1.msra.mxu0 %v935
    %937 = vmatprep.subr.mxu0 0.0
    %v938 = vand.u32 %v746, 4294901760
    %v939 = vsub.f32 %v746, %v938
    %v940 = vand.u32 %v939, 4294901760
    %v941 = vsub.f32 %v939, %v940
    %v942 = vand.u32 %v941, 4294901760
    %943 = vmatpush1.msra.mxu0 %v942
    %944 = vmatprep.subr.mxu0 0.0
    %v945 = vand.u32 %v747, 4294901760
    %v946 = vsub.f32 %v747, %v945
    %v947 = vand.u32 %v946, 4294901760
    %v948 = vsub.f32 %v946, %v947
    %v949 = vand.u32 %v948, 4294901760
    %950 = vmatpush1.msra.mxu0 %v949
    %951 = vmatprep.subr.mxu0 0.0
    %952 = vmatpush1.msra.mxu0 0.0
    %953 = vmatprep.subr.mxu0 0.0
    %954 = vmatpush1.msra.mxu0 0.0
    %955 = vmatprep.subr.mxu0 0.0
    %956 = vmatpush1.msra.mxu0 0.0
    %957 = vmatprep.subr.mxu0 0.0
    %958 = vmatpush1.msra.mxu0 0.0
    %959 = vmatprep.subr.mxu0 0.0
    %960 = vmatpush1.msra.mxu0 0.0
    %961 = vmatprep.subr.mxu0 0.0
    %962 = vmatpush1.msra.mxu0 0.0
    %963 = vmatprep.subr.mxu0 0.0
    %964 = vmatpush1.msra.mxu0 0.0
    %965 = vmatprep.subr.mxu0 0.0
    %966 = vmatpush1.msra.mxu0 0.0
    %967 = vmatprep.subr.mxu0 0.0
    %968 = vmatpush1.msra.mxu0 0.0
    %969 = vmatprep.subr.mxu0 0.0
    %970 = vmatpush1.msra.mxu0 0.0
    %971 = vmatprep.subr.mxu0 0.0
    %972 = vmatpush1.msra.mxu0 0.0
    %973 = vmatprep.subr.mxu0 0.0
    %974 = vmatpush1.msra.mxu0 0.0
    %975 = vmatprep.subr.mxu0 0.0
    %976 = vmatpush1.msra.mxu0 0.0
    %977 = vmatprep.subr.mxu0 0.0
    %978 = vmatpush1.msra.mxu0 0.0
    %979 = vmatprep.subr.mxu0 0.0
    %980 = vmatpush1.msra.mxu0 0.0
    %981 = vmatprep.subr.mxu0 0.0
    %982 = vmatpush1.msra.mxu0 0.0
    %983 = vmatprep.mubr.f32.mxu0 0.0
    %v984 = vand.u32 %v731, 4294901760
    %985 = vmatmul.mubr.f32.gmra.mrb[0].mxu0 %v984
    %v986 = vpop.f32.mrb[0].mxu0
    %v987 = vadd.f32 %v836, %v986
    %v988 = vpop.f32.mrb[0].mxu0
    %989 = vdwg.mxu0
    %990 = vmatprep.subr.mxu0 0.0
    %v991 = vand.u32 %v732, 4294901760
    %v992 = vsub.f32 %v732, %v991
    %993 = vmatpush1.msra.mxu0 %v992
    %994 = vmatprep.subr.mxu0 0.0
    %v995 = vand.u32 %v733, 4294901760
    %v996 = vsub.f32 %v733, %v995
    %997 = vmatpush1.msra.mxu0 %v996
    %998 = vmatprep.subr.mxu0 0.0
    %v999 = vand.u32 %v734, 4294901760
    %v1000 = vsub.f32 %v734, %v999
    %1001 = vmatpush1.msra.mxu0 %v1000
    %1002 = vmatprep.subr.mxu0 0.0
    %v1003 = vand.u32 %v735, 4294901760
    %v1004 = vsub.f32 %v735, %v1003
    %1005 = vmatpush1.msra.mxu0 %v1004
    %1006 = vmatprep.subr.mxu0 0.0
    %v1007 = vand.u32 %v736, 4294901760
    %v1008 = vsub.f32 %v736, %v1007
    %1009 = vmatpush1.msra.mxu0 %v1008
    %1010 = vmatprep.subr.mxu0 0.0
    %v1011 = vand.u32 %v737, 4294901760
    %v1012 = vsub.f32 %v737, %v1011
    %1013 = vmatpush1.msra.mxu0 %v1012
    %1014 = vmatprep.subr.mxu0 0.0
    %v1015 = vand.u32 %v738, 4294901760
    %v1016 = vsub.f32 %v738, %v1015
    %1017 = vmatpush1.msra.mxu0 %v1016
    %1018 = vmatprep.subr.mxu0 0.0
    %v1019 = vand.u32 %v739, 4294901760
    %v1020 = vsub.f32 %v739, %v1019
    %1021 = vmatpush1.msra.mxu0 %v1020
    %1022 = vmatprep.subr.mxu0 0.0
    %v1023 = vand.u32 %v740, 4294901760
    %v1024 = vsub.f32 %v740, %v1023
    %1025 = vmatpush1.msra.mxu0 %v1024
    %1026 = vmatprep.subr.mxu0 0.0
    %v1027 = vand.u32 %v741, 4294901760
    %v1028 = vsub.f32 %v741, %v1027
    %1029 = vmatpush1.msra.mxu0 %v1028
    %1030 = vmatprep.subr.mxu0 0.0
    %v1031 = vand.u32 %v742, 4294901760
    %v1032 = vsub.f32 %v742, %v1031
    %1033 = vmatpush1.msra.mxu0 %v1032
    %1034 = vmatprep.subr.mxu0 0.0
    %v1035 = vand.u32 %v743, 4294901760
    %v1036 = vsub.f32 %v743, %v1035
    %1037 = vmatpush1.msra.mxu0 %v1036
    %1038 = vmatprep.subr.mxu0 0.0
    %v1039 = vand.u32 %v744, 4294901760
    %v1040 = vsub.f32 %v744, %v1039
    %1041 = vmatpush1.msra.mxu0 %v1040
    %1042 = vmatprep.subr.mxu0 0.0
    %v1043 = vand.u32 %v745, 4294901760
    %v1044 = vsub.f32 %v745, %v1043
    %1045 = vmatpush1.msra.mxu0 %v1044
    %1046 = vmatprep.subr.mxu0 0.0
    %v1047 = vand.u32 %v746, 4294901760
    %v1048 = vsub.f32 %v746, %v1047
    %1049 = vmatpush1.msra.mxu0 %v1048
    %1050 = vmatprep.subr.mxu0 0.0
    %v1051 = vand.u32 %v747, 4294901760
    %v1052 = vsub.f32 %v747, %v1051
    %1053 = vmatpush1.msra.mxu0 %v1052
    %1054 = vmatprep.subr.mxu0 0.0
    %1055 = vmatpush1.msra.mxu0 0.0
    %1056 = vmatprep.subr.mxu0 0.0
    %1057 = vmatpush1.msra.mxu0 0.0
    %1058 = vmatprep.subr.mxu0 0.0
    %1059 = vmatpush1.msra.mxu0 0.0
    %1060 = vmatprep.subr.mxu0 0.0
    %1061 = vmatpush1.msra.mxu0 0.0
    %1062 = vmatprep.subr.mxu0 0.0
    %1063 = vmatpush1.msra.mxu0 0.0
    %1064 = vmatprep.subr.mxu0 0.0
    %1065 = vmatpush1.msra.mxu0 0.0
    %1066 = vmatprep.subr.mxu0 0.0
    %1067 = vmatpush1.msra.mxu0 0.0
    %1068 = vmatprep.subr.mxu0 0.0
    %1069 = vmatpush1.msra.mxu0 0.0
    %1070 = vmatprep.subr.mxu0 0.0
    %1071 = vmatpush1.msra.mxu0 0.0
    %1072 = vmatprep.subr.mxu0 0.0
    %1073 = vmatpush1.msra.mxu0 0.0
    %1074 = vmatprep.subr.mxu0 0.0
    %1075 = vmatpush1.msra.mxu0 0.0
    %1076 = vmatprep.subr.mxu0 0.0
    %1077 = vmatpush1.msra.mxu0 0.0
    %1078 = vmatprep.subr.mxu0 0.0
    %1079 = vmatpush1.msra.mxu0 0.0
    %1080 = vmatprep.subr.mxu0 0.0
    %1081 = vmatpush1.msra.mxu0 0.0
    %1082 = vmatprep.subr.mxu0 0.0
    %1083 = vmatpush1.msra.mxu0 0.0
    %1084 = vmatprep.subr.mxu0 0.0
    %1085 = vmatpush1.msra.mxu0 0.0
    %1086 = vmatprep.mubr.f32.mxu0 0.0
    %v1087 = vand.u32 %v731, 4294901760
    %v1088 = vsub.f32 %v731, %v1087
    %1089 = vmatmul.mubr.f32.gmra.mrb[0].mxu0 %v1088
    %v1090 = vpop.f32.mrb[0].mxu0
    %v1091 = vadd.f32 %v987, %v1090
    %v1092 = vpop.f32.mrb[0].mxu0
    %1093 = vdwg.mxu0
    %1094 = vmatprep.subr.mxu0 0.0
    %v1095 = vand.u32 %v732, 4294901760
    %1096 = vmatpush1.msra.mxu0 %v1095
    %1097 = vmatprep.subr.mxu0 0.0
    %v1098 = vand.u32 %v733, 4294901760
    %1099 = vmatpush1.msra.mxu0 %v1098
    %1100 = vmatprep.subr.mxu0 0.0
    %v1101 = vand.u32 %v734, 4294901760
    %1102 = vmatpush1.msra.mxu0 %v1101
    %1103 = vmatprep.subr.mxu0 0.0
    %v1104 = vand.u32 %v735, 4294901760
    %1105 = vmatpush1.msra.mxu0 %v1104
    %1106 = vmatprep.subr.mxu0 0.0
    %v1107 = vand.u32 %v736, 4294901760
    %1108 = vmatpush1.msra.mxu0 %v1107
    %1109 = vmatprep.subr.mxu0 0.0
    %v1110 = vand.u32 %v737, 4294901760
    %1111 = vmatpush1.msra.mxu0 %v1110
    %1112 = vmatprep.subr.mxu0 0.0
    %v1113 = vand.u32 %v738, 4294901760
    %1114 = vmatpush1.msra.mxu0 %v1113
    %1115 = vmatprep.subr.mxu0 0.0
    %v1116 = vand.u32 %v739, 4294901760
    %1117 = vmatpush1.msra.mxu0 %v1116
    %1118 = vmatprep.subr.mxu0 0.0
    %v1119 = vand.u32 %v740, 4294901760
    %1120 = vmatpush1.msra.mxu0 %v1119
    %1121 = vmatprep.subr.mxu0 0.0
    %v1122 = vand.u32 %v741, 4294901760
    %1123 = vmatpush1.msra.mxu0 %v1122
    %1124 = vmatprep.subr.mxu0 0.0
    %v1125 = vand.u32 %v742, 4294901760
    %1126 = vmatpush1.msra.mxu0 %v1125
    %1127 = vmatprep.subr.mxu0 0.0
    %v1128 = vand.u32 %v743, 4294901760
    %1129 = vmatpush1.msra.mxu0 %v1128
    %1130 = vmatprep.subr.mxu0 0.0
    %v1131 = vand.u32 %v744, 4294901760
    %1132 = vmatpush1.msra.mxu0 %v1131
    %1133 = vmatprep.subr.mxu0 0.0
    %v1134 = vand.u32 %v745, 4294901760
    %1135 = vmatpush1.msra.mxu0 %v1134
    %1136 = vmatprep.subr.mxu0 0.0
    %v1137 = vand.u32 %v746, 4294901760
    %1138 = vmatpush1.msra.mxu0 %v1137
    %1139 = vmatprep.subr.mxu0 0.0
    %v1140 = vand.u32 %v747, 4294901760
    %1141 = vmatpush1.msra.mxu0 %v1140
    %1142 = vmatprep.subr.mxu0 0.0
    %1143 = vmatpush1.msra.mxu0 0.0
    %1144 = vmatprep.subr.mxu0 0.0
    %1145 = vmatpush1.msra.mxu0 0.0
    %1146 = vmatprep.subr.mxu0 0.0
    %1147 = vmatpush1.msra.mxu0 0.0
    %1148 = vmatprep.subr.mxu0 0.0
    %1149 = vmatpush1.msra.mxu0 0.0
    %1150 = vmatprep.subr.mxu0 0.0
    %1151 = vmatpush1.msra.mxu0 0.0
    %1152 = vmatprep.subr.mxu0 0.0
    %1153 = vmatpush1.msra.mxu0 0.0
    %1154 = vmatprep.subr.mxu0 0.0
    %1155 = vmatpush1.msra.mxu0 0.0
    %1156 = vmatprep.subr.mxu0 0.0
    %1157 = vmatpush1.msra.mxu0 0.0
    %1158 = vmatprep.subr.mxu0 0.0
    %1159 = vmatpush1.msra.mxu0 0.0
    %1160 = vmatprep.subr.mxu0 0.0
    %1161 = vmatpush1.msra.mxu0 0.0
    %1162 = vmatprep.subr.mxu0 0.0
    %1163 = vmatpush1.msra.mxu0 0.0
    %1164 = vmatprep.subr.mxu0 0.0
    %1165 = vmatpush1.msra.mxu0 0.0
    %1166 = vmatprep.subr.mxu0 0.0
    %1167 = vmatpush1.msra.mxu0 0.0
    %1168 = vmatprep.subr.mxu0 0.0
    %1169 = vmatpush1.msra.mxu0 0.0
    %1170 = vmatprep.subr.mxu0 0.0
    %1171 = vmatpush1.msra.mxu0 0.0
    %1172 = vmatprep.subr.mxu0 0.0
    %1173 = vmatpush1.msra.mxu0 0.0
    %1174 = vmatprep.mubr.f32.mxu0 0.0
    %v1175 = vand.u32 %v731, 4294901760
    %v1176 = vsub.f32 %v731, %v1175
    %v1177 = vand.u32 %v1176, 4294901760
    %1178 = vmatmul.mubr.f32.gmra.mrb[0].mxu0 %v1177
    %v1179 = vpop.f32.mrb[0].mxu0
    %v1180 = vadd.f32 %v1091, %v1179
    %v1181 = vpop.f32.mrb[0].mxu0
    %1182 = vdwg.mxu0
    %1183 = vmatprep.subr.mxu0 0.0
    %v1184 = vand.u32 %v732, 4294901760
    %v1185 = vsub.f32 %v732, %v1184
    %v1186 = vand.u32 %v1185, 4294901760
    %1187 = vmatpush1.msra.mxu0 %v1186
    %1188 = vmatprep.subr.mxu0 0.0
    %v1189 = vand.u32 %v733, 4294901760
    %v1190 = vsub.f32 %v733, %v1189
    %v1191 = vand.u32 %v1190, 4294901760
    %1192 = vmatpush1.msra.mxu0 %v1191
    %1193 = vmatprep.subr.mxu0 0.0
    %v1194 = vand.u32 %v734, 4294901760
    %v1195 = vsub.f32 %v734, %v1194
    %v1196 = vand.u32 %v1195, 4294901760
    %1197 = vmatpush1.msra.mxu0 %v1196
    %1198 = vmatprep.subr.mxu0 0.0
    %v1199 = vand.u32 %v735, 4294901760
    %v1200 = vsub.f32 %v735, %v1199
    %v1201 = vand.u32 %v1200, 4294901760
    %1202 = vmatpush1.msra.mxu0 %v1201
    %1203 = vmatprep.subr.mxu0 0.0
    %v1204 = vand.u32 %v736, 4294901760
    %v1205 = vsub.f32 %v736, %v1204
    %v1206 = vand.u32 %v1205, 4294901760
    %1207 = vmatpush1.msra.mxu0 %v1206
    %1208 = vmatprep.subr.mxu0 0.0
    %v1209 = vand.u32 %v737, 4294901760
    %v1210 = vsub.f32 %v737, %v1209
    %v1211 = vand.u32 %v1210, 4294901760
    %1212 = vmatpush1.msra.mxu0 %v1211
    %1213 = vmatprep.subr.mxu0 0.0
    %v1214 = vand.u32 %v738, 4294901760
    %v1215 = vsub.f32 %v738, %v1214
    %v1216 = vand.u32 %v1215, 4294901760
    %1217 = vmatpush1.msra.mxu0 %v1216
    %1218 = vmatprep.subr.mxu0 0.0
    %v1219 = vand.u32 %v739, 4294901760
    %v1220 = vsub.f32 %v739, %v1219
    %v1221 = vand.u32 %v1220, 4294901760
    %1222 = vmatpush1.msra.mxu0 %v1221
    %1223 = vmatprep.subr.mxu0 0.0
    %v1224 = vand.u32 %v740, 4294901760
    %v1225 = vsub.f32 %v740, %v1224
    %v1226 = vand.u32 %v1225, 4294901760
    %1227 = vmatpush1.msra.mxu0 %v1226
    %1228 = vmatprep.subr.mxu0 0.0
    %v1229 = vand.u32 %v741, 4294901760
    %v1230 = vsub.f32 %v741, %v1229
    %v1231 = vand.u32 %v1230, 4294901760
    %1232 = vmatpush1.msra.mxu0 %v1231
    %1233 = vmatprep.subr.mxu0 0.0
    %v1234 = vand.u32 %v742, 4294901760
    %v1235 = vsub.f32 %v742, %v1234
    %v1236 = vand.u32 %v1235, 4294901760
    %1237 = vmatpush1.msra.mxu0 %v1236
    %1238 = vmatprep.subr.mxu0 0.0
    %v1239 = vand.u32 %v743, 4294901760
    %v1240 = vsub.f32 %v743, %v1239
    %v1241 = vand.u32 %v1240, 4294901760
    %1242 = vmatpush1.msra.mxu0 %v1241
    %1243 = vmatprep.subr.mxu0 0.0
    %v1244 = vand.u32 %v744, 4294901760
    %v1245 = vsub.f32 %v744, %v1244
    %v1246 = vand.u32 %v1245, 4294901760
    %1247 = vmatpush1.msra.mxu0 %v1246
    %1248 = vmatprep.subr.mxu0 0.0
    %v1249 = vand.u32 %v745, 4294901760
    %v1250 = vsub.f32 %v745, %v1249
    %v1251 = vand.u32 %v1250, 4294901760
    %1252 = vmatpush1.msra.mxu0 %v1251
    %1253 = vmatprep.subr.mxu0 0.0
    %v1254 = vand.u32 %v746, 4294901760
    %v1255 = vsub.f32 %v746, %v1254
    %v1256 = vand.u32 %v1255, 4294901760
    %1257 = vmatpush1.msra.mxu0 %v1256
    %1258 = vmatprep.subr.mxu0 0.0
    %v1259 = vand.u32 %v747, 4294901760
    %v1260 = vsub.f32 %v747, %v1259
    %v1261 = vand.u32 %v1260, 4294901760
    %1262 = vmatpush1.msra.mxu0 %v1261
    %1263 = vmatprep.subr.mxu0 0.0
    %1264 = vmatpush1.msra.mxu0 0.0
    %1265 = vmatprep.subr.mxu0 0.0
    %1266 = vmatpush1.msra.mxu0 0.0
    %1267 = vmatprep.subr.mxu0 0.0
    %1268 = vmatpush1.msra.mxu0 0.0
    %1269 = vmatprep.subr.mxu0 0.0
    %1270 = vmatpush1.msra.mxu0 0.0
    %1271 = vmatprep.subr.mxu0 0.0
    %1272 = vmatpush1.msra.mxu0 0.0
    %1273 = vmatprep.subr.mxu0 0.0
    %1274 = vmatpush1.msra.mxu0 0.0
    %1275 = vmatprep.subr.mxu0 0.0
    %1276 = vmatpush1.msra.mxu0 0.0
    %1277 = vmatprep.subr.mxu0 0.0
    %1278 = vmatpush1.msra.mxu0 0.0
    %1279 = vmatprep.subr.mxu0 0.0
    %1280 = vmatpush1.msra.mxu0 0.0
    %1281 = vmatprep.subr.mxu0 0.0
    %1282 = vmatpush1.msra.mxu0 0.0
    %1283 = vmatprep.subr.mxu0 0.0
    %1284 = vmatpush1.msra.mxu0 0.0
    %1285 = vmatprep.subr.mxu0 0.0
    %1286 = vmatpush1.msra.mxu0 0.0
    %1287 = vmatprep.subr.mxu0 0.0
    %1288 = vmatpush1.msra.mxu0 0.0
    %1289 = vmatprep.subr.mxu0 0.0
    %1290 = vmatpush1.msra.mxu0 0.0
    %1291 = vmatprep.subr.mxu0 0.0
    %1292 = vmatpush1.msra.mxu0 0.0
    %1293 = vmatprep.subr.mxu0 0.0
    %1294 = vmatpush1.msra.mxu0 0.0
    %1295 = vmatprep.mubr.f32.mxu0 0.0
    %v1296 = vand.u32 %v731, 4294901760
    %1297 = vmatmul.mubr.f32.gmra.mrb[0].mxu0 %v1296
    %v1298 = vpop.f32.mrb[0].mxu0
    %v1299 = vadd.f32 %v1180, %v1298
    %v1300 = vpop.f32.mrb[0].mxu0
    %1301 = vdwg.mxu0
    %1302 = vmatprep.subr.mxu0 0.0
    %v1303 = vand.u32 %v732, 4294901760
    %1304 = vmatpush1.msra.mxu0 %v1303
    %1305 = vmatprep.subr.mxu0 0.0
    %v1306 = vand.u32 %v733, 4294901760
    %1307 = vmatpush1.msra.mxu0 %v1306
    %1308 = vmatprep.subr.mxu0 0.0
    %v1309 = vand.u32 %v734, 4294901760
    %1310 = vmatpush1.msra.mxu0 %v1309
    %1311 = vmatprep.subr.mxu0 0.0
    %v1312 = vand.u32 %v735, 4294901760
    %1313 = vmatpush1.msra.mxu0 %v1312
    %1314 = vmatprep.subr.mxu0 0.0
    %v1315 = vand.u32 %v736, 4294901760
    %1316 = vmatpush1.msra.mxu0 %v1315
    %1317 = vmatprep.subr.mxu0 0.0
    %v1318 = vand.u32 %v737, 4294901760
    %1319 = vmatpush1.msra.mxu0 %v1318
    %1320 = vmatprep.subr.mxu0 0.0
    %v1321 = vand.u32 %v738, 4294901760
    %1322 = vmatpush1.msra.mxu0 %v1321
    %1323 = vmatprep.subr.mxu0 0.0
    %v1324 = vand.u32 %v739, 4294901760
    %1325 = vmatpush1.msra.mxu0 %v1324
    %1326 = vmatprep.subr.mxu0 0.0
    %v1327 = vand.u32 %v740, 4294901760
    %1328 = vmatpush1.msra.mxu0 %v1327
    %1329 = vmatprep.subr.mxu0 0.0
    %v1330 = vand.u32 %v741, 4294901760
    %1331 = vmatpush1.msra.mxu0 %v1330
    %1332 = vmatprep.subr.mxu0 0.0
    %v1333 = vand.u32 %v742, 4294901760
    %1334 = vmatpush1.msra.mxu0 %v1333
    %1335 = vmatprep.subr.mxu0 0.0
    %v1336 = vand.u32 %v743, 4294901760
    %1337 = vmatpush1.msra.mxu0 %v1336
    %1338 = vmatprep.subr.mxu0 0.0
    %v1339 = vand.u32 %v744, 4294901760
    %1340 = vmatpush1.msra.mxu0 %v1339
    %1341 = vmatprep.subr.mxu0 0.0
    %v1342 = vand.u32 %v745, 4294901760
    %1343 = vmatpush1.msra.mxu0 %v1342
    %1344 = vmatprep.subr.mxu0 0.0
    %v1345 = vand.u32 %v746, 4294901760
    %1346 = vmatpush1.msra.mxu0 %v1345
    %1347 = vmatprep.subr.mxu0 0.0
    %v1348 = vand.u32 %v747, 4294901760
    %1349 = vmatpush1.msra.mxu0 %v1348
    %1350 = vmatprep.subr.mxu0 0.0
    %1351 = vmatpush1.msra.mxu0 0.0
    %1352 = vmatprep.subr.mxu0 0.0
    %1353 = vmatpush1.msra.mxu0 0.0
    %1354 = vmatprep.subr.mxu0 0.0
    %1355 = vmatpush1.msra.mxu0 0.0
    %1356 = vmatprep.subr.mxu0 0.0
    %1357 = vmatpush1.msra.mxu0 0.0
    %1358 = vmatprep.subr.mxu0 0.0
    %1359 = vmatpush1.msra.mxu0 0.0
    %1360 = vmatprep.subr.mxu0 0.0
    %1361 = vmatpush1.msra.mxu0 0.0
    %1362 = vmatprep.subr.mxu0 0.0
    %1363 = vmatpush1.msra.mxu0 0.0
    %1364 = vmatprep.subr.mxu0 0.0
    %1365 = vmatpush1.msra.mxu0 0.0
    %1366 = vmatprep.subr.mxu0 0.0
    %1367 = vmatpush1.msra.mxu0 0.0
    %1368 = vmatprep.subr.mxu0 0.0
    %1369 = vmatpush1.msra.mxu0 0.0
    %1370 = vmatprep.subr.mxu0 0.0
    %1371 = vmatpush1.msra.mxu0 0.0
    %1372 = vmatprep.subr.mxu0 0.0
    %1373 = vmatpush1.msra.mxu0 0.0
    %1374 = vmatprep.subr.mxu0 0.0
    %1375 = vmatpush1.msra.mxu0 0.0
    %1376 = vmatprep.subr.mxu0 0.0
    %1377 = vmatpush1.msra.mxu0 0.0
    %1378 = vmatprep.subr.mxu0 0.0
    %1379 = vmatpush1.msra.mxu0 0.0
    %1380 = vmatprep.subr.mxu0 0.0
    %1381 = vmatpush1.msra.mxu0 0.0
    %1382 = vmatprep.mubr.f32.mxu0 0.0
    %v1383 = vand.u32 %v731, 4294901760
    %1384 = vmatmul.mubr.f32.gmra.mrb[0].mxu0 %v1383
    %v1385 = vpop.f32.mrb[0].mxu0
    %v1386 = vadd.f32 %v1299, %v1385
    %v1387 = vpop.f32.mrb[0].mxu0
    %1388 = vdwg.mxu0
    %v1389 = vsel %vm65, %v729, 0.0
    %1390 = vmatprep.subr.mxu0 0.0
    %v1391 = vand.u32 %v732, 4294901760
    %1392 = vmatpush1.msra.mxu0 %v1391
    %1393 = vmatprep.subr.mxu0 0.0
    %v1394 = vand.u32 %v733, 4294901760
    %1395 = vmatpush1.msra.mxu0 %v1394
    %1396 = vmatprep.subr.mxu0 0.0
    %v1397 = vand.u32 %v734, 4294901760
    %1398 = vmatpush1.msra.mxu0 %v1397
    %1399 = vmatprep.subr.mxu0 0.0
    %v1400 = vand.u32 %v735, 4294901760
    %1401 = vmatpush1.msra.mxu0 %v1400
    %1402 = vmatprep.subr.mxu0 0.0
    %v1403 = vand.u32 %v736, 4294901760
    %1404 = vmatpush1.msra.mxu0 %v1403
    %1405 = vmatprep.subr.mxu0 0.0
    %v1406 = vand.u32 %v737, 4294901760
    %1407 = vmatpush1.msra.mxu0 %v1406
    %1408 = vmatprep.subr.mxu0 0.0
    %v1409 = vand.u32 %v738, 4294901760
    %1410 = vmatpush1.msra.mxu0 %v1409
    %1411 = vmatprep.subr.mxu0 0.0
    %v1412 = vand.u32 %v739, 4294901760
    %1413 = vmatpush1.msra.mxu0 %v1412
    %1414 = vmatprep.subr.mxu0 0.0
    %v1415 = vand.u32 %v740, 4294901760
    %1416 = vmatpush1.msra.mxu0 %v1415
    %1417 = vmatprep.subr.mxu0 0.0
    %v1418 = vand.u32 %v741, 4294901760
    %1419 = vmatpush1.msra.mxu0 %v1418
    %1420 = vmatprep.subr.mxu0 0.0
    %v1421 = vand.u32 %v742, 4294901760
    %1422 = vmatpush1.msra.mxu0 %v1421
    %1423 = vmatprep.subr.mxu0 0.0
    %v1424 = vand.u32 %v743, 4294901760
    %1425 = vmatpush1.msra.mxu0 %v1424
    %1426 = vmatprep.subr.mxu0 0.0
    %v1427 = vand.u32 %v744, 4294901760
    %1428 = vmatpush1.msra.mxu0 %v1427
    %1429 = vmatprep.subr.mxu0 0.0
    %v1430 = vand.u32 %v745, 4294901760
    %1431 = vmatpush1.msra.mxu0 %v1430
    %1432 = vmatprep.subr.mxu0 0.0
    %v1433 = vand.u32 %v746, 4294901760
    %1434 = vmatpush1.msra.mxu0 %v1433
    %1435 = vmatprep.subr.mxu0 0.0
    %v1436 = vand.u32 %v747, 4294901760
    %1437 = vmatpush1.msra.mxu0 %v1436
    %1438 = vmatprep.subr.mxu0 0.0
    %1439 = vmatpush1.msra.mxu0 0.0
    %1440 = vmatprep.subr.mxu0 0.0
    %1441 = vmatpush1.msra.mxu0 0.0
    %1442 = vmatprep.subr.mxu0 0.0
    %1443 = vmatpush1.msra.mxu0 0.0
    %1444 = vmatprep.subr.mxu0 0.0
    %1445 = vmatpush1.msra.mxu0 0.0
    %1446 = vmatprep.subr.mxu0 0.0
    %1447 = vmatpush1.msra.mxu0 0.0
    %1448 = vmatprep.subr.mxu0 0.0
    %1449 = vmatpush1.msra.mxu0 0.0
    %1450 = vmatprep.subr.mxu0 0.0
    %1451 = vmatpush1.msra.mxu0 0.0
    %1452 = vmatprep.subr.mxu0 0.0
    %1453 = vmatpush1.msra.mxu0 0.0
    %1454 = vmatprep.subr.mxu0 0.0
    %1455 = vmatpush1.msra.mxu0 0.0
    %1456 = vmatprep.subr.mxu0 0.0
    %1457 = vmatpush1.msra.mxu0 0.0
    %1458 = vmatprep.subr.mxu0 0.0
    %1459 = vmatpush1.msra.mxu0 0.0
    %1460 = vmatprep.subr.mxu0 0.0
    %1461 = vmatpush1.msra.mxu0 0.0
    %1462 = vmatprep.subr.mxu0 0.0
    %1463 = vmatpush1.msra.mxu0 0.0
    %1464 = vmatprep.subr.mxu0 0.0
    %1465 = vmatpush1.msra.mxu0 0.0
    %1466 = vmatprep.subr.mxu0 0.0
    %1467 = vmatpush1.msra.mxu0 0.0
    %1468 = vmatprep.subr.mxu0 0.0
    %1469 = vmatpush1.msra.mxu0 0.0
    %1470 = vmatprep.mubr.f32.mxu0 0.0
    %v1471 = vand.u32 %v1389, 4294901760
    %v1472 = vsub.f32 %v1389, %v1471
    %v1473 = vand.u32 %v1472, 4294901760
    %v1474 = vsub.f32 %v1472, %v1473
    %v1475 = vand.u32 %v1474, 4294901760
    %1476 = vmatmul.mubr.f32.gmra.mrb[0].mxu0 %v1475
    %v1477 = vpop.f32.mrb[0].mxu0
    %v1478 = vadd.f32 0.0, %v1477
    %v1479 = vpop.f32.mrb[0].mxu0
    %1480 = vdwg.mxu0
    %1481 = vmatprep.subr.mxu0 0.0
    %v1482 = vand.u32 %v732, 4294901760
    %v1483 = vsub.f32 %v732, %v1482
    %v1484 = vand.u32 %v1483, 4294901760
    %v1485 = vsub.f32 %v1483, %v1484
    %v1486 = vand.u32 %v1485, 4294901760
    %1487 = vmatpush1.msra.mxu0 %v1486
    %1488 = vmatprep.subr.mxu0 0.0
    %v1489 = vand.u32 %v733, 4294901760
    %v1490 = vsub.f32 %v733, %v1489
    %v1491 = vand.u32 %v1490, 4294901760
    %v1492 = vsub.f32 %v1490, %v1491
    %v1493 = vand.u32 %v1492, 4294901760
    %1494 = vmatpush1.msra.mxu0 %v1493
    %1495 = vmatprep.subr.mxu0 0.0
    %v1496 = vand.u32 %v734, 4294901760
    %v1497 = vsub.f32 %v734, %v1496
    %v1498 = vand.u32 %v1497, 4294901760
    %v1499 = vsub.f32 %v1497, %v1498
    %v1500 = vand.u32 %v1499, 4294901760
    %1501 = vmatpush1.msra.mxu0 %v1500
    %1502 = vmatprep.subr.mxu0 0.0
    %v1503 = vand.u32 %v735, 4294901760
    %v1504 = vsub.f32 %v735, %v1503
    %v1505 = vand.u32 %v1504, 4294901760
    %v1506 = vsub.f32 %v1504, %v1505
    %v1507 = vand.u32 %v1506, 4294901760
    %1508 = vmatpush1.msra.mxu0 %v1507
    %1509 = vmatprep.subr.mxu0 0.0
    %v1510 = vand.u32 %v736, 4294901760
    %v1511 = vsub.f32 %v736, %v1510
    %v1512 = vand.u32 %v1511, 4294901760
    %v1513 = vsub.f32 %v1511, %v1512
    %v1514 = vand.u32 %v1513, 4294901760
    %1515 = vmatpush1.msra.mxu0 %v1514
    %1516 = vmatprep.subr.mxu0 0.0
    %v1517 = vand.u32 %v737, 4294901760
    %v1518 = vsub.f32 %v737, %v1517
    %v1519 = vand.u32 %v1518, 4294901760
    %v1520 = vsub.f32 %v1518, %v1519
    %v1521 = vand.u32 %v1520, 4294901760
    %1522 = vmatpush1.msra.mxu0 %v1521
    %1523 = vmatprep.subr.mxu0 0.0
    %v1524 = vand.u32 %v738, 4294901760
    %v1525 = vsub.f32 %v738, %v1524
    %v1526 = vand.u32 %v1525, 4294901760
    %v1527 = vsub.f32 %v1525, %v1526
    %v1528 = vand.u32 %v1527, 4294901760
    %1529 = vmatpush1.msra.mxu0 %v1528
    %1530 = vmatprep.subr.mxu0 0.0
    %v1531 = vand.u32 %v739, 4294901760
    %v1532 = vsub.f32 %v739, %v1531
    %v1533 = vand.u32 %v1532, 4294901760
    %v1534 = vsub.f32 %v1532, %v1533
    %v1535 = vand.u32 %v1534, 4294901760
    %1536 = vmatpush1.msra.mxu0 %v1535
    %1537 = vmatprep.subr.mxu0 0.0
    %v1538 = vand.u32 %v740, 4294901760
    %v1539 = vsub.f32 %v740, %v1538
    %v1540 = vand.u32 %v1539, 4294901760
    %v1541 = vsub.f32 %v1539, %v1540
    %v1542 = vand.u32 %v1541, 4294901760
    %1543 = vmatpush1.msra.mxu0 %v1542
    %1544 = vmatprep.subr.mxu0 0.0
    %v1545 = vand.u32 %v741, 4294901760
    %v1546 = vsub.f32 %v741, %v1545
    %v1547 = vand.u32 %v1546, 4294901760
    %v1548 = vsub.f32 %v1546, %v1547
    %v1549 = vand.u32 %v1548, 4294901760
    %1550 = vmatpush1.msra.mxu0 %v1549
    %1551 = vmatprep.subr.mxu0 0.0
    %v1552 = vand.u32 %v742, 4294901760
    %v1553 = vsub.f32 %v742, %v1552
    %v1554 = vand.u32 %v1553, 4294901760
    %v1555 = vsub.f32 %v1553, %v1554
    %v1556 = vand.u32 %v1555, 4294901760
    %1557 = vmatpush1.msra.mxu0 %v1556
    %1558 = vmatprep.subr.mxu0 0.0
    %v1559 = vand.u32 %v743, 4294901760
    %v1560 = vsub.f32 %v743, %v1559
    %v1561 = vand.u32 %v1560, 4294901760
    %v1562 = vsub.f32 %v1560, %v1561
    %v1563 = vand.u32 %v1562, 4294901760
    %1564 = vmatpush1.msra.mxu0 %v1563
    %1565 = vmatprep.subr.mxu0 0.0
    %v1566 = vand.u32 %v744, 4294901760
    %v1567 = vsub.f32 %v744, %v1566
    %v1568 = vand.u32 %v1567, 4294901760
    %v1569 = vsub.f32 %v1567, %v1568
    %v1570 = vand.u32 %v1569, 4294901760
    %1571 = vmatpush1.msra.mxu0 %v1570
    %1572 = vmatprep.subr.mxu0 0.0
    %v1573 = vand.u32 %v745, 4294901760
    %v1574 = vsub.f32 %v745, %v1573
    %v1575 = vand.u32 %v1574, 4294901760
    %v1576 = vsub.f32 %v1574, %v1575
    %v1577 = vand.u32 %v1576, 4294901760
    %1578 = vmatpush1.msra.mxu0 %v1577
    %1579 = vmatprep.subr.mxu0 0.0
    %v1580 = vand.u32 %v746, 4294901760
    %v1581 = vsub.f32 %v746, %v1580
    %v1582 = vand.u32 %v1581, 4294901760
    %v1583 = vsub.f32 %v1581, %v1582
    %v1584 = vand.u32 %v1583, 4294901760
    %1585 = vmatpush1.msra.mxu0 %v1584
    %1586 = vmatprep.subr.mxu0 0.0
    %v1587 = vand.u32 %v747, 4294901760
    %v1588 = vsub.f32 %v747, %v1587
    %v1589 = vand.u32 %v1588, 4294901760
    %v1590 = vsub.f32 %v1588, %v1589
    %v1591 = vand.u32 %v1590, 4294901760
    %1592 = vmatpush1.msra.mxu0 %v1591
    %1593 = vmatprep.subr.mxu0 0.0
    %1594 = vmatpush1.msra.mxu0 0.0
    %1595 = vmatprep.subr.mxu0 0.0
    %1596 = vmatpush1.msra.mxu0 0.0
    %1597 = vmatprep.subr.mxu0 0.0
    %1598 = vmatpush1.msra.mxu0 0.0
    %1599 = vmatprep.subr.mxu0 0.0
    %1600 = vmatpush1.msra.mxu0 0.0
    %1601 = vmatprep.subr.mxu0 0.0
    %1602 = vmatpush1.msra.mxu0 0.0
    %1603 = vmatprep.subr.mxu0 0.0
    %1604 = vmatpush1.msra.mxu0 0.0
    %1605 = vmatprep.subr.mxu0 0.0
    %1606 = vmatpush1.msra.mxu0 0.0
    %1607 = vmatprep.subr.mxu0 0.0
    %1608 = vmatpush1.msra.mxu0 0.0
    %1609 = vmatprep.subr.mxu0 0.0
    %1610 = vmatpush1.msra.mxu0 0.0
    %1611 = vmatprep.subr.mxu0 0.0
    %1612 = vmatpush1.msra.mxu0 0.0
    %1613 = vmatprep.subr.mxu0 0.0
    %1614 = vmatpush1.msra.mxu0 0.0
    %1615 = vmatprep.subr.mxu0 0.0
    %1616 = vmatpush1.msra.mxu0 0.0
    %1617 = vmatprep.subr.mxu0 0.0
    %1618 = vmatpush1.msra.mxu0 0.0
    %1619 = vmatprep.subr.mxu0 0.0
    %1620 = vmatpush1.msra.mxu0 0.0
    %1621 = vmatprep.subr.mxu0 0.0
    %1622 = vmatpush1.msra.mxu0 0.0
    %1623 = vmatprep.subr.mxu0 0.0
    %1624 = vmatpush1.msra.mxu0 0.0
    %1625 = vmatprep.mubr.f32.mxu0 0.0
    %v1626 = vand.u32 %v1389, 4294901760
    %1627 = vmatmul.mubr.f32.gmra.mrb[0].mxu0 %v1626
    %v1628 = vpop.f32.mrb[0].mxu0
    %v1629 = vadd.f32 %v1478, %v1628
    %v1630 = vpop.f32.mrb[0].mxu0
    %1631 = vdwg.mxu0
    %1632 = vmatprep.subr.mxu0 0.0
    %v1633 = vand.u32 %v732, 4294901760
    %v1634 = vsub.f32 %v732, %v1633
    %1635 = vmatpush1.msra.mxu0 %v1634
    %1636 = vmatprep.subr.mxu0 0.0
    %v1637 = vand.u32 %v733, 4294901760
    %v1638 = vsub.f32 %v733, %v1637
    %1639 = vmatpush1.msra.mxu0 %v1638
    %1640 = vmatprep.subr.mxu0 0.0
    %v1641 = vand.u32 %v734, 4294901760
    %v1642 = vsub.f32 %v734, %v1641
    %1643 = vmatpush1.msra.mxu0 %v1642
    %1644 = vmatprep.subr.mxu0 0.0
    %v1645 = vand.u32 %v735, 4294901760
    %v1646 = vsub.f32 %v735, %v1645
    %1647 = vmatpush1.msra.mxu0 %v1646
    %1648 = vmatprep.subr.mxu0 0.0
    %v1649 = vand.u32 %v736, 4294901760
    %v1650 = vsub.f32 %v736, %v1649
    %1651 = vmatpush1.msra.mxu0 %v1650
    %1652 = vmatprep.subr.mxu0 0.0
    %v1653 = vand.u32 %v737, 4294901760
    %v1654 = vsub.f32 %v737, %v1653
    %1655 = vmatpush1.msra.mxu0 %v1654
    %1656 = vmatprep.subr.mxu0 0.0
    %v1657 = vand.u32 %v738, 4294901760
    %v1658 = vsub.f32 %v738, %v1657
    %1659 = vmatpush1.msra.mxu0 %v1658
    %1660 = vmatprep.subr.mxu0 0.0
    %v1661 = vand.u32 %v739, 4294901760
    %v1662 = vsub.f32 %v739, %v1661
    %1663 = vmatpush1.msra.mxu0 %v1662
    %1664 = vmatprep.subr.mxu0 0.0
    %v1665 = vand.u32 %v740, 4294901760
    %v1666 = vsub.f32 %v740, %v1665
    %1667 = vmatpush1.msra.mxu0 %v1666
    %1668 = vmatprep.subr.mxu0 0.0
    %v1669 = vand.u32 %v741, 4294901760
    %v1670 = vsub.f32 %v741, %v1669
    %1671 = vmatpush1.msra.mxu0 %v1670
    %1672 = vmatprep.subr.mxu0 0.0
    %v1673 = vand.u32 %v742, 4294901760
    %v1674 = vsub.f32 %v742, %v1673
    %1675 = vmatpush1.msra.mxu0 %v1674
    %1676 = vmatprep.subr.mxu0 0.0
    %v1677 = vand.u32 %v743, 4294901760
    %v1678 = vsub.f32 %v743, %v1677
    %1679 = vmatpush1.msra.mxu0 %v1678
    %1680 = vmatprep.subr.mxu0 0.0
    %v1681 = vand.u32 %v744, 4294901760
    %v1682 = vsub.f32 %v744, %v1681
    %1683 = vmatpush1.msra.mxu0 %v1682
    %1684 = vmatprep.subr.mxu0 0.0
    %v1685 = vand.u32 %v745, 4294901760
    %v1686 = vsub.f32 %v745, %v1685
    %1687 = vmatpush1.msra.mxu0 %v1686
    %1688 = vmatprep.subr.mxu0 0.0
    %v1689 = vand.u32 %v746, 4294901760
    %v1690 = vsub.f32 %v746, %v1689
    %1691 = vmatpush1.msra.mxu0 %v1690
    %1692 = vmatprep.subr.mxu0 0.0
    %v1693 = vand.u32 %v747, 4294901760
    %v1694 = vsub.f32 %v747, %v1693
    %1695 = vmatpush1.msra.mxu0 %v1694
    %1696 = vmatprep.subr.mxu0 0.0
    %1697 = vmatpush1.msra.mxu0 0.0
    %1698 = vmatprep.subr.mxu0 0.0
    %1699 = vmatpush1.msra.mxu0 0.0
    %1700 = vmatprep.subr.mxu0 0.0
    %1701 = vmatpush1.msra.mxu0 0.0
    %1702 = vmatprep.subr.mxu0 0.0
    %1703 = vmatpush1.msra.mxu0 0.0
    %1704 = vmatprep.subr.mxu0 0.0
    %1705 = vmatpush1.msra.mxu0 0.0
    %1706 = vmatprep.subr.mxu0 0.0
    %1707 = vmatpush1.msra.mxu0 0.0
    %1708 = vmatprep.subr.mxu0 0.0
    %1709 = vmatpush1.msra.mxu0 0.0
    %1710 = vmatprep.subr.mxu0 0.0
    %1711 = vmatpush1.msra.mxu0 0.0
    %1712 = vmatprep.subr.mxu0 0.0
    %1713 = vmatpush1.msra.mxu0 0.0
    %1714 = vmatprep.subr.mxu0 0.0
    %1715 = vmatpush1.msra.mxu0 0.0
    %1716 = vmatprep.subr.mxu0 0.0
    %1717 = vmatpush1.msra.mxu0 0.0
    %1718 = vmatprep.subr.mxu0 0.0
    %1719 = vmatpush1.msra.mxu0 0.0
    %1720 = vmatprep.subr.mxu0 0.0
    %1721 = vmatpush1.msra.mxu0 0.0
    %1722 = vmatprep.subr.mxu0 0.0
    %1723 = vmatpush1.msra.mxu0 0.0
    %1724 = vmatprep.subr.mxu0 0.0
    %1725 = vmatpush1.msra.mxu0 0.0
    %1726 = vmatprep.subr.mxu0 0.0
    %1727 = vmatpush1.msra.mxu0 0.0
    %1728 = vmatprep.mubr.f32.mxu0 0.0
    %v1729 = vand.u32 %v1389, 4294901760
    %v1730 = vsub.f32 %v1389, %v1729
    %1731 = vmatmul.mubr.f32.gmra.mrb[0].mxu0 %v1730
    %v1732 = vpop.f32.mrb[0].mxu0
    %v1733 = vadd.f32 %v1629, %v1732
    %v1734 = vpop.f32.mrb[0].mxu0
    %1735 = vdwg.mxu0
    %1736 = vmatprep.subr.mxu0 0.0
    %v1737 = vand.u32 %v732, 4294901760
    %1738 = vmatpush1.msra.mxu0 %v1737
    %1739 = vmatprep.subr.mxu0 0.0
    %v1740 = vand.u32 %v733, 4294901760
    %1741 = vmatpush1.msra.mxu0 %v1740
    %1742 = vmatprep.subr.mxu0 0.0
    %v1743 = vand.u32 %v734, 4294901760
    %1744 = vmatpush1.msra.mxu0 %v1743
    %1745 = vmatprep.subr.mxu0 0.0
    %v1746 = vand.u32 %v735, 4294901760
    %1747 = vmatpush1.msra.mxu0 %v1746
    %1748 = vmatprep.subr.mxu0 0.0
    %v1749 = vand.u32 %v736, 4294901760
    %1750 = vmatpush1.msra.mxu0 %v1749
    %1751 = vmatprep.subr.mxu0 0.0
    %v1752 = vand.u32 %v737, 4294901760
    %1753 = vmatpush1.msra.mxu0 %v1752
    %1754 = vmatprep.subr.mxu0 0.0
    %v1755 = vand.u32 %v738, 4294901760
    %1756 = vmatpush1.msra.mxu0 %v1755
    %1757 = vmatprep.subr.mxu0 0.0
    %v1758 = vand.u32 %v739, 4294901760
    %1759 = vmatpush1.msra.mxu0 %v1758
    %1760 = vmatprep.subr.mxu0 0.0
    %v1761 = vand.u32 %v740, 4294901760
    %1762 = vmatpush1.msra.mxu0 %v1761
    %1763 = vmatprep.subr.mxu0 0.0
    %v1764 = vand.u32 %v741, 4294901760
    %1765 = vmatpush1.msra.mxu0 %v1764
    %1766 = vmatprep.subr.mxu0 0.0
    %v1767 = vand.u32 %v742, 4294901760
    %1768 = vmatpush1.msra.mxu0 %v1767
    %1769 = vmatprep.subr.mxu0 0.0
    %v1770 = vand.u32 %v743, 4294901760
    %1771 = vmatpush1.msra.mxu0 %v1770
    %1772 = vmatprep.subr.mxu0 0.0
    %v1773 = vand.u32 %v744, 4294901760
    %1774 = vmatpush1.msra.mxu0 %v1773
    %1775 = vmatprep.subr.mxu0 0.0
    %v1776 = vand.u32 %v745, 4294901760
    %1777 = vmatpush1.msra.mxu0 %v1776
    %1778 = vmatprep.subr.mxu0 0.0
    %v1779 = vand.u32 %v746, 4294901760
    %1780 = vmatpush1.msra.mxu0 %v1779
    %1781 = vmatprep.subr.mxu0 0.0
    %v1782 = vand.u32 %v747, 4294901760
    %1783 = vmatpush1.msra.mxu0 %v1782
    %1784 = vmatprep.subr.mxu0 0.0
    %1785 = vmatpush1.msra.mxu0 0.0
    %1786 = vmatprep.subr.mxu0 0.0
    %1787 = vmatpush1.msra.mxu0 0.0
    %1788 = vmatprep.subr.mxu0 0.0
    %1789 = vmatpush1.msra.mxu0 0.0
    %1790 = vmatprep.subr.mxu0 0.0
    %1791 = vmatpush1.msra.mxu0 0.0
    %1792 = vmatprep.subr.mxu0 0.0
    %1793 = vmatpush1.msra.mxu0 0.0
    %1794 = vmatprep.subr.mxu0 0.0
    %1795 = vmatpush1.msra.mxu0 0.0
    %1796 = vmatprep.subr.mxu0 0.0
    %1797 = vmatpush1.msra.mxu0 0.0
    %1798 = vmatprep.subr.mxu0 0.0
    %1799 = vmatpush1.msra.mxu0 0.0
    %1800 = vmatprep.subr.mxu0 0.0
    %1801 = vmatpush1.msra.mxu0 0.0
    %1802 = vmatprep.subr.mxu0 0.0
    %1803 = vmatpush1.msra.mxu0 0.0
    %1804 = vmatprep.subr.mxu0 0.0
    %1805 = vmatpush1.msra.mxu0 0.0
    %1806 = vmatprep.subr.mxu0 0.0
    %1807 = vmatpush1.msra.mxu0 0.0
    %1808 = vmatprep.subr.mxu0 0.0
    %1809 = vmatpush1.msra.mxu0 0.0
    %1810 = vmatprep.subr.mxu0 0.0
    %1811 = vmatpush1.msra.mxu0 0.0
    %1812 = vmatprep.subr.mxu0 0.0
    %1813 = vmatpush1.msra.mxu0 0.0
    %1814 = vmatprep.subr.mxu0 0.0
    %1815 = vmatpush1.msra.mxu0 0.0
    %1816 = vmatprep.mubr.f32.mxu0 0.0
    %v1817 = vand.u32 %v1389, 4294901760
    %v1818 = vsub.f32 %v1389, %v1817
    %v1819 = vand.u32 %v1818, 4294901760
    %1820 = vmatmul.mubr.f32.gmra.mrb[0].mxu0 %v1819
    %v1821 = vpop.f32.mrb[0].mxu0
    %v1822 = vadd.f32 %v1733, %v1821
    %v1823 = vpop.f32.mrb[0].mxu0
    %1824 = vdwg.mxu0
    %1825 = vmatprep.subr.mxu0 0.0
    %v1826 = vand.u32 %v732, 4294901760
    %v1827 = vsub.f32 %v732, %v1826
    %v1828 = vand.u32 %v1827, 4294901760
    %1829 = vmatpush1.msra.mxu0 %v1828
    %1830 = vmatprep.subr.mxu0 0.0
    %v1831 = vand.u32 %v733, 4294901760
    %v1832 = vsub.f32 %v733, %v1831
    %v1833 = vand.u32 %v1832, 4294901760
    %1834 = vmatpush1.msra.mxu0 %v1833
    %1835 = vmatprep.subr.mxu0 0.0
    %v1836 = vand.u32 %v734, 4294901760
    %v1837 = vsub.f32 %v734, %v1836
    %v1838 = vand.u32 %v1837, 4294901760
    %1839 = vmatpush1.msra.mxu0 %v1838
    %1840 = vmatprep.subr.mxu0 0.0
    %v1841 = vand.u32 %v735, 4294901760
    %v1842 = vsub.f32 %v735, %v1841
    %v1843 = vand.u32 %v1842, 4294901760
    %1844 = vmatpush1.msra.mxu0 %v1843
    %1845 = vmatprep.subr.mxu0 0.0
    %v1846 = vand.u32 %v736, 4294901760
    %v1847 = vsub.f32 %v736, %v1846
    %v1848 = vand.u32 %v1847, 4294901760
    %1849 = vmatpush1.msra.mxu0 %v1848
    %1850 = vmatprep.subr.mxu0 0.0
    %v1851 = vand.u32 %v737, 4294901760
    %v1852 = vsub.f32 %v737, %v1851
    %v1853 = vand.u32 %v1852, 4294901760
    %1854 = vmatpush1.msra.mxu0 %v1853
    %1855 = vmatprep.subr.mxu0 0.0
    %v1856 = vand.u32 %v738, 4294901760
    %v1857 = vsub.f32 %v738, %v1856
    %v1858 = vand.u32 %v1857, 4294901760
    %1859 = vmatpush1.msra.mxu0 %v1858
    %1860 = vmatprep.subr.mxu0 0.0
    %v1861 = vand.u32 %v739, 4294901760
    %v1862 = vsub.f32 %v739, %v1861
    %v1863 = vand.u32 %v1862, 4294901760
    %1864 = vmatpush1.msra.mxu0 %v1863
    %1865 = vmatprep.subr.mxu0 0.0
    %v1866 = vand.u32 %v740, 4294901760
    %v1867 = vsub.f32 %v740, %v1866
    %v1868 = vand.u32 %v1867, 4294901760
    %1869 = vmatpush1.msra.mxu0 %v1868
    %1870 = vmatprep.subr.mxu0 0.0
    %v1871 = vand.u32 %v741, 4294901760
    %v1872 = vsub.f32 %v741, %v1871
    %v1873 = vand.u32 %v1872, 4294901760
    %1874 = vmatpush1.msra.mxu0 %v1873
    %1875 = vmatprep.subr.mxu0 0.0
    %v1876 = vand.u32 %v742, 4294901760
    %v1877 = vsub.f32 %v742, %v1876
    %v1878 = vand.u32 %v1877, 4294901760
    %1879 = vmatpush1.msra.mxu0 %v1878
    %1880 = vmatprep.subr.mxu0 0.0
    %v1881 = vand.u32 %v743, 4294901760
    %v1882 = vsub.f32 %v743, %v1881
    %v1883 = vand.u32 %v1882, 4294901760
    %1884 = vmatpush1.msra.mxu0 %v1883
    %1885 = vmatprep.subr.mxu0 0.0
    %v1886 = vand.u32 %v744, 4294901760
    %v1887 = vsub.f32 %v744, %v1886
    %v1888 = vand.u32 %v1887, 4294901760
    %1889 = vmatpush1.msra.mxu0 %v1888
    %1890 = vmatprep.subr.mxu0 0.0
    %v1891 = vand.u32 %v745, 4294901760
    %v1892 = vsub.f32 %v745, %v1891
    %v1893 = vand.u32 %v1892, 4294901760
    %1894 = vmatpush1.msra.mxu0 %v1893
    %1895 = vmatprep.subr.mxu0 0.0
    %v1896 = vand.u32 %v746, 4294901760
    %v1897 = vsub.f32 %v746, %v1896
    %v1898 = vand.u32 %v1897, 4294901760
    %1899 = vmatpush1.msra.mxu0 %v1898
    %1900 = vmatprep.subr.mxu0 0.0
    %v1901 = vand.u32 %v747, 4294901760
    %v1902 = vsub.f32 %v747, %v1901
    %v1903 = vand.u32 %v1902, 4294901760
    %1904 = vmatpush1.msra.mxu0 %v1903
    %1905 = vmatprep.subr.mxu0 0.0
    %1906 = vmatpush1.msra.mxu0 0.0
    %1907 = vmatprep.subr.mxu0 0.0
    %1908 = vmatpush1.msra.mxu0 0.0
    %1909 = vmatprep.subr.mxu0 0.0
    %1910 = vmatpush1.msra.mxu0 0.0
    %1911 = vmatprep.subr.mxu0 0.0
    %1912 = vmatpush1.msra.mxu0 0.0
    %1913 = vmatprep.subr.mxu0 0.0
    %1914 = vmatpush1.msra.mxu0 0.0
    %1915 = vmatprep.subr.mxu0 0.0
    %1916 = vmatpush1.msra.mxu0 0.0
    %1917 = vmatprep.subr.mxu0 0.0
    %1918 = vmatpush1.msra.mxu0 0.0
    %1919 = vmatprep.subr.mxu0 0.0
    %1920 = vmatpush1.msra.mxu0 0.0
    %1921 = vmatprep.subr.mxu0 0.0
    %1922 = vmatpush1.msra.mxu0 0.0
    %1923 = vmatprep.subr.mxu0 0.0
    %1924 = vmatpush1.msra.mxu0 0.0
    %1925 = vmatprep.subr.mxu0 0.0
    %1926 = vmatpush1.msra.mxu0 0.0
    %1927 = vmatprep.subr.mxu0 0.0
    %1928 = vmatpush1.msra.mxu0 0.0
    %1929 = vmatprep.subr.mxu0 0.0
    %1930 = vmatpush1.msra.mxu0 0.0
    %1931 = vmatprep.subr.mxu0 0.0
    %1932 = vmatpush1.msra.mxu0 0.0
    %1933 = vmatprep.subr.mxu0 0.0
    %1934 = vmatpush1.msra.mxu0 0.0
    %1935 = vmatprep.subr.mxu0 0.0
    %1936 = vmatpush1.msra.mxu0 0.0
    %1937 = vmatprep.mubr.f32.mxu0 0.0
    %v1938 = vand.u32 %v1389, 4294901760
    %1939 = vmatmul.mubr.f32.gmra.mrb[0].mxu0 %v1938
    %v1940 = vpop.f32.mrb[0].mxu0
    %v1941 = vadd.f32 %v1822, %v1940
    %v1942 = vpop.f32.mrb[0].mxu0
    %1943 = vdwg.mxu0
    %1944 = vmatprep.subr.mxu0 0.0
    %v1945 = vand.u32 %v732, 4294901760
    %1946 = vmatpush1.msra.mxu0 %v1945
    %1947 = vmatprep.subr.mxu0 0.0
    %v1948 = vand.u32 %v733, 4294901760
    %1949 = vmatpush1.msra.mxu0 %v1948
    %1950 = vmatprep.subr.mxu0 0.0
    %v1951 = vand.u32 %v734, 4294901760
    %1952 = vmatpush1.msra.mxu0 %v1951
    %1953 = vmatprep.subr.mxu0 0.0
    %v1954 = vand.u32 %v735, 4294901760
    %1955 = vmatpush1.msra.mxu0 %v1954
    %1956 = vmatprep.subr.mxu0 0.0
    %v1957 = vand.u32 %v736, 4294901760
    %1958 = vmatpush1.msra.mxu0 %v1957
    %1959 = vmatprep.subr.mxu0 0.0
    %v1960 = vand.u32 %v737, 4294901760
    %1961 = vmatpush1.msra.mxu0 %v1960
    %1962 = vmatprep.subr.mxu0 0.0
    %v1963 = vand.u32 %v738, 4294901760
    %1964 = vmatpush1.msra.mxu0 %v1963
    %1965 = vmatprep.subr.mxu0 0.0
    %v1966 = vand.u32 %v739, 4294901760
    %1967 = vmatpush1.msra.mxu0 %v1966
    %1968 = vmatprep.subr.mxu0 0.0
    %v1969 = vand.u32 %v740, 4294901760
    %1970 = vmatpush1.msra.mxu0 %v1969
    %1971 = vmatprep.subr.mxu0 0.0
    %v1972 = vand.u32 %v741, 4294901760
    %1973 = vmatpush1.msra.mxu0 %v1972
    %1974 = vmatprep.subr.mxu0 0.0
    %v1975 = vand.u32 %v742, 4294901760
    %1976 = vmatpush1.msra.mxu0 %v1975
    %1977 = vmatprep.subr.mxu0 0.0
    %v1978 = vand.u32 %v743, 4294901760
    %1979 = vmatpush1.msra.mxu0 %v1978
    %1980 = vmatprep.subr.mxu0 0.0
    %v1981 = vand.u32 %v744, 4294901760
    %1982 = vmatpush1.msra.mxu0 %v1981
    %1983 = vmatprep.subr.mxu0 0.0
    %v1984 = vand.u32 %v745, 4294901760
    %1985 = vmatpush1.msra.mxu0 %v1984
    %1986 = vmatprep.subr.mxu0 0.0
    %v1987 = vand.u32 %v746, 4294901760
    %1988 = vmatpush1.msra.mxu0 %v1987
    %1989 = vmatprep.subr.mxu0 0.0
    %v1990 = vand.u32 %v747, 4294901760
    %1991 = vmatpush1.msra.mxu0 %v1990
    %1992 = vmatprep.subr.mxu0 0.0
    %1993 = vmatpush1.msra.mxu0 0.0
    %1994 = vmatprep.subr.mxu0 0.0
    %1995 = vmatpush1.msra.mxu0 0.0
    %1996 = vmatprep.subr.mxu0 0.0
    %1997 = vmatpush1.msra.mxu0 0.0
    %1998 = vmatprep.subr.mxu0 0.0
    %1999 = vmatpush1.msra.mxu0 0.0
    %2000 = vmatprep.subr.mxu0 0.0
    %2001 = vmatpush1.msra.mxu0 0.0
    %2002 = vmatprep.subr.mxu0 0.0
    %2003 = vmatpush1.msra.mxu0 0.0
    %2004 = vmatprep.subr.mxu0 0.0
    %2005 = vmatpush1.msra.mxu0 0.0
    %2006 = vmatprep.subr.mxu0 0.0
    %2007 = vmatpush1.msra.mxu0 0.0
    %2008 = vmatprep.subr.mxu0 0.0
    %2009 = vmatpush1.msra.mxu0 0.0
    %2010 = vmatprep.subr.mxu0 0.0
    %2011 = vmatpush1.msra.mxu0 0.0
    %2012 = vmatprep.subr.mxu0 0.0
    %2013 = vmatpush1.msra.mxu0 0.0
    %2014 = vmatprep.subr.mxu0 0.0
    %2015 = vmatpush1.msra.mxu0 0.0
    %2016 = vmatprep.subr.mxu0 0.0
    %2017 = vmatpush1.msra.mxu0 0.0
    %2018 = vmatprep.subr.mxu0 0.0
    %2019 = vmatpush1.msra.mxu0 0.0
    %2020 = vmatprep.subr.mxu0 0.0
    %2021 = vmatpush1.msra.mxu0 0.0
    %2022 = vmatprep.subr.mxu0 0.0
    %2023 = vmatpush1.msra.mxu0 0.0
    %2024 = vmatprep.mubr.f32.mxu0 0.0
    %v2025 = vand.u32 %v1389, 4294901760
    %2026 = vmatmul.mubr.f32.gmra.mrb[0].mxu0 %v2025
    %v2027 = vpop.f32.mrb[0].mxu0
    %v2028 = vadd.f32 %v1941, %v2027
    %v2029 = vpop.f32.mrb[0].mxu0
    %2030 = vdwg.mxu0
    %v2031 = vsel %vm65, 1, 0
    %v2032 = vcvt.s32.f32 %v2031
    %v2033 = vld [vmem:[%s4] sm:$0xff]
    %v2034 = vld [vmem:[%s4 + $0x8] sm:$0xff]
    %v2035 = vld [vmem:[%s4 + $0x10] sm:$0xff]
    %v2036 = vld [vmem:[%s4 + $0x18] sm:$0xff]
    %v2037 = vld [vmem:[%s4 + $0x20] sm:$0xff]
    %v2038 = vld [vmem:[%s4 + $0x28] sm:$0xff]
    %v2039 = vld [vmem:[%s4 + $0x30] sm:$0xff]
    %v2040 = vld [vmem:[%s4 + $0x38] sm:$0xff]
    %v2041 = vld [vmem:[%s4 + $0x40] sm:$0xff]
    %v2042 = vld [vmem:[%s4 + $0x48] sm:$0xff]
    %v2043 = vld [vmem:[%s4 + $0x50] sm:$0xff]
    %v2044 = vld [vmem:[%s4 + $0x58] sm:$0xff]
    %v2045 = vld [vmem:[%s4 + $0x60] sm:$0xff]
    %v2046 = vld [vmem:[%s4 + $0x68] sm:$0xff]
    %v2047 = vld [vmem:[%s4 + $0x70] sm:$0xff]
    %v2048 = vld [vmem:[%s4 + $0x78] sm:$0xff]
    %2049 = vmatprep.subr.mxu0 0.0
    %v2050 = vand.u32 %v2033, 4294901760
    %2051 = vmatpush1.msra.mxu0 %v2050
    %2052 = vmatprep.subr.mxu0 0.0
    %v2053 = vand.u32 %v2034, 4294901760
    %2054 = vmatpush1.msra.mxu0 %v2053
    %2055 = vmatprep.subr.mxu0 0.0
    %v2056 = vand.u32 %v2035, 4294901760
    %2057 = vmatpush1.msra.mxu0 %v2056
    %2058 = vmatprep.subr.mxu0 0.0
    %v2059 = vand.u32 %v2036, 4294901760
    %2060 = vmatpush1.msra.mxu0 %v2059
    %2061 = vmatprep.subr.mxu0 0.0
    %v2062 = vand.u32 %v2037, 4294901760
    %2063 = vmatpush1.msra.mxu0 %v2062
    %2064 = vmatprep.subr.mxu0 0.0
    %v2065 = vand.u32 %v2038, 4294901760
    %2066 = vmatpush1.msra.mxu0 %v2065
    %2067 = vmatprep.subr.mxu0 0.0
    %v2068 = vand.u32 %v2039, 4294901760
    %2069 = vmatpush1.msra.mxu0 %v2068
    %2070 = vmatprep.subr.mxu0 0.0
    %v2071 = vand.u32 %v2040, 4294901760
    %2072 = vmatpush1.msra.mxu0 %v2071
    %2073 = vmatprep.subr.mxu0 0.0
    %v2074 = vand.u32 %v2041, 4294901760
    %2075 = vmatpush1.msra.mxu0 %v2074
    %2076 = vmatprep.subr.mxu0 0.0
    %v2077 = vand.u32 %v2042, 4294901760
    %2078 = vmatpush1.msra.mxu0 %v2077
    %2079 = vmatprep.subr.mxu0 0.0
    %v2080 = vand.u32 %v2043, 4294901760
    %2081 = vmatpush1.msra.mxu0 %v2080
    %2082 = vmatprep.subr.mxu0 0.0
    %v2083 = vand.u32 %v2044, 4294901760
    %2084 = vmatpush1.msra.mxu0 %v2083
    %2085 = vmatprep.subr.mxu0 0.0
    %v2086 = vand.u32 %v2045, 4294901760
    %2087 = vmatpush1.msra.mxu0 %v2086
    %2088 = vmatprep.subr.mxu0 0.0
    %v2089 = vand.u32 %v2046, 4294901760
    %2090 = vmatpush1.msra.mxu0 %v2089
    %2091 = vmatprep.subr.mxu0 0.0
    %v2092 = vand.u32 %v2047, 4294901760
    %2093 = vmatpush1.msra.mxu0 %v2092
    %2094 = vmatprep.subr.mxu0 0.0
    %v2095 = vand.u32 %v2048, 4294901760
    %2096 = vmatpush1.msra.mxu0 %v2095
    %2097 = vmatprep.subr.mxu0 0.0
    %2098 = vmatpush1.msra.mxu0 0.0
    %2099 = vmatprep.subr.mxu0 0.0
    %2100 = vmatpush1.msra.mxu0 0.0
    %2101 = vmatprep.subr.mxu0 0.0
    %2102 = vmatpush1.msra.mxu0 0.0
    %2103 = vmatprep.subr.mxu0 0.0
    %2104 = vmatpush1.msra.mxu0 0.0
    %2105 = vmatprep.subr.mxu0 0.0
    %2106 = vmatpush1.msra.mxu0 0.0
    %2107 = vmatprep.subr.mxu0 0.0
    %2108 = vmatpush1.msra.mxu0 0.0
    %2109 = vmatprep.subr.mxu0 0.0
    %2110 = vmatpush1.msra.mxu0 0.0
    %2111 = vmatprep.subr.mxu0 0.0
    %2112 = vmatpush1.msra.mxu0 0.0
    %2113 = vmatprep.subr.mxu0 0.0
    %2114 = vmatpush1.msra.mxu0 0.0
    %2115 = vmatprep.subr.mxu0 0.0
    %2116 = vmatpush1.msra.mxu0 0.0
    %2117 = vmatprep.subr.mxu0 0.0
    %2118 = vmatpush1.msra.mxu0 0.0
    %2119 = vmatprep.subr.mxu0 0.0
    %2120 = vmatpush1.msra.mxu0 0.0
    %2121 = vmatprep.subr.mxu0 0.0
    %2122 = vmatpush1.msra.mxu0 0.0
    %2123 = vmatprep.subr.mxu0 0.0
    %2124 = vmatpush1.msra.mxu0 0.0
    %2125 = vmatprep.subr.mxu0 0.0
    %2126 = vmatpush1.msra.mxu0 0.0
    %2127 = vmatprep.subr.mxu0 0.0
    %2128 = vmatpush1.msra.mxu0 0.0
    %2129 = vmatprep.mubr.f32.mxu0 0.0
    %v2130 = vand.u32 %v2032, 4294901760
    %v2131 = vsub.f32 %v2032, %v2130
    %v2132 = vand.u32 %v2131, 4294901760
    %v2133 = vsub.f32 %v2131, %v2132
    %v2134 = vand.u32 %v2133, 4294901760
    %2135 = vmatmul.mubr.f32.gmra.mrb[0].mxu0 %v2134
    %v2136 = vpop.f32.mrb[0].mxu0
    %v2137 = vadd.f32 0.0, %v2136
    %v2138 = vpop.f32.mrb[0].mxu0
    %2139 = vdwg.mxu0
    %2140 = vmatprep.subr.mxu0 0.0
    %v2141 = vand.u32 %v2033, 4294901760
    %v2142 = vsub.f32 %v2033, %v2141
    %v2143 = vand.u32 %v2142, 4294901760
    %v2144 = vsub.f32 %v2142, %v2143
    %v2145 = vand.u32 %v2144, 4294901760
    %2146 = vmatpush1.msra.mxu0 %v2145
    %2147 = vmatprep.subr.mxu0 0.0
    %v2148 = vand.u32 %v2034, 4294901760
    %v2149 = vsub.f32 %v2034, %v2148
    %v2150 = vand.u32 %v2149, 4294901760
    %v2151 = vsub.f32 %v2149, %v2150
    %v2152 = vand.u32 %v2151, 4294901760
    %2153 = vmatpush1.msra.mxu0 %v2152
    %2154 = vmatprep.subr.mxu0 0.0
    %v2155 = vand.u32 %v2035, 4294901760
    %v2156 = vsub.f32 %v2035, %v2155
    %v2157 = vand.u32 %v2156, 4294901760
    %v2158 = vsub.f32 %v2156, %v2157
    %v2159 = vand.u32 %v2158, 4294901760
    %2160 = vmatpush1.msra.mxu0 %v2159
    %2161 = vmatprep.subr.mxu0 0.0
    %v2162 = vand.u32 %v2036, 4294901760
    %v2163 = vsub.f32 %v2036, %v2162
    %v2164 = vand.u32 %v2163, 4294901760
    %v2165 = vsub.f32 %v2163, %v2164
    %v2166 = vand.u32 %v2165, 4294901760
    %2167 = vmatpush1.msra.mxu0 %v2166
    %2168 = vmatprep.subr.mxu0 0.0
    %v2169 = vand.u32 %v2037, 4294901760
    %v2170 = vsub.f32 %v2037, %v2169
    %v2171 = vand.u32 %v2170, 4294901760
    %v2172 = vsub.f32 %v2170, %v2171
    %v2173 = vand.u32 %v2172, 4294901760
    %2174 = vmatpush1.msra.mxu0 %v2173
    %2175 = vmatprep.subr.mxu0 0.0
    %v2176 = vand.u32 %v2038, 4294901760
    %v2177 = vsub.f32 %v2038, %v2176
    %v2178 = vand.u32 %v2177, 4294901760
    %v2179 = vsub.f32 %v2177, %v2178
    %v2180 = vand.u32 %v2179, 4294901760
    %2181 = vmatpush1.msra.mxu0 %v2180
    %2182 = vmatprep.subr.mxu0 0.0
    %v2183 = vand.u32 %v2039, 4294901760
    %v2184 = vsub.f32 %v2039, %v2183
    %v2185 = vand.u32 %v2184, 4294901760
    %v2186 = vsub.f32 %v2184, %v2185
    %v2187 = vand.u32 %v2186, 4294901760
    %2188 = vmatpush1.msra.mxu0 %v2187
    %2189 = vmatprep.subr.mxu0 0.0
    %v2190 = vand.u32 %v2040, 4294901760
    %v2191 = vsub.f32 %v2040, %v2190
    %v2192 = vand.u32 %v2191, 4294901760
    %v2193 = vsub.f32 %v2191, %v2192
    %v2194 = vand.u32 %v2193, 4294901760
    %2195 = vmatpush1.msra.mxu0 %v2194
    %2196 = vmatprep.subr.mxu0 0.0
    %v2197 = vand.u32 %v2041, 4294901760
    %v2198 = vsub.f32 %v2041, %v2197
    %v2199 = vand.u32 %v2198, 4294901760
    %v2200 = vsub.f32 %v2198, %v2199
    %v2201 = vand.u32 %v2200, 4294901760
    %2202 = vmatpush1.msra.mxu0 %v2201
    %2203 = vmatprep.subr.mxu0 0.0
    %v2204 = vand.u32 %v2042, 4294901760
    %v2205 = vsub.f32 %v2042, %v2204
    %v2206 = vand.u32 %v2205, 4294901760
    %v2207 = vsub.f32 %v2205, %v2206
    %v2208 = vand.u32 %v2207, 4294901760
    %2209 = vmatpush1.msra.mxu0 %v2208
    %2210 = vmatprep.subr.mxu0 0.0
    %v2211 = vand.u32 %v2043, 4294901760
    %v2212 = vsub.f32 %v2043, %v2211
    %v2213 = vand.u32 %v2212, 4294901760
    %v2214 = vsub.f32 %v2212, %v2213
    %v2215 = vand.u32 %v2214, 4294901760
    %2216 = vmatpush1.msra.mxu0 %v2215
    %2217 = vmatprep.subr.mxu0 0.0
    %v2218 = vand.u32 %v2044, 4294901760
    %v2219 = vsub.f32 %v2044, %v2218
    %v2220 = vand.u32 %v2219, 4294901760
    %v2221 = vsub.f32 %v2219, %v2220
    %v2222 = vand.u32 %v2221, 4294901760
    %2223 = vmatpush1.msra.mxu0 %v2222
    %2224 = vmatprep.subr.mxu0 0.0
    %v2225 = vand.u32 %v2045, 4294901760
    %v2226 = vsub.f32 %v2045, %v2225
    %v2227 = vand.u32 %v2226, 4294901760
    %v2228 = vsub.f32 %v2226, %v2227
    %v2229 = vand.u32 %v2228, 4294901760
    %2230 = vmatpush1.msra.mxu0 %v2229
    %2231 = vmatprep.subr.mxu0 0.0
    %v2232 = vand.u32 %v2046, 4294901760
    %v2233 = vsub.f32 %v2046, %v2232
    %v2234 = vand.u32 %v2233, 4294901760
    %v2235 = vsub.f32 %v2233, %v2234
    %v2236 = vand.u32 %v2235, 4294901760
    %2237 = vmatpush1.msra.mxu0 %v2236
    %2238 = vmatprep.subr.mxu0 0.0
    %v2239 = vand.u32 %v2047, 4294901760
    %v2240 = vsub.f32 %v2047, %v2239
    %v2241 = vand.u32 %v2240, 4294901760
    %v2242 = vsub.f32 %v2240, %v2241
    %v2243 = vand.u32 %v2242, 4294901760
    %2244 = vmatpush1.msra.mxu0 %v2243
    %2245 = vmatprep.subr.mxu0 0.0
    %v2246 = vand.u32 %v2048, 4294901760
    %v2247 = vsub.f32 %v2048, %v2246
    %v2248 = vand.u32 %v2247, 4294901760
    %v2249 = vsub.f32 %v2247, %v2248
    %v2250 = vand.u32 %v2249, 4294901760
    %2251 = vmatpush1.msra.mxu0 %v2250
    %2252 = vmatprep.subr.mxu0 0.0
    %2253 = vmatpush1.msra.mxu0 0.0
    %2254 = vmatprep.subr.mxu0 0.0
    %2255 = vmatpush1.msra.mxu0 0.0
    %2256 = vmatprep.subr.mxu0 0.0
    %2257 = vmatpush1.msra.mxu0 0.0
    %2258 = vmatprep.subr.mxu0 0.0
    %2259 = vmatpush1.msra.mxu0 0.0
    %2260 = vmatprep.subr.mxu0 0.0
    %2261 = vmatpush1.msra.mxu0 0.0
    %2262 = vmatprep.subr.mxu0 0.0
    %2263 = vmatpush1.msra.mxu0 0.0
    %2264 = vmatprep.subr.mxu0 0.0
    %2265 = vmatpush1.msra.mxu0 0.0
    %2266 = vmatprep.subr.mxu0 0.0
    %2267 = vmatpush1.msra.mxu0 0.0
    %2268 = vmatprep.subr.mxu0 0.0
    %2269 = vmatpush1.msra.mxu0 0.0
    %2270 = vmatprep.subr.mxu0 0.0
    %2271 = vmatpush1.msra.mxu0 0.0
    %2272 = vmatprep.subr.mxu0 0.0
    %2273 = vmatpush1.msra.mxu0 0.0
    %2274 = vmatprep.subr.mxu0 0.0
    %2275 = vmatpush1.msra.mxu0 0.0
    %2276 = vmatprep.subr.mxu0 0.0
    %2277 = vmatpush1.msra.mxu0 0.0
    %2278 = vmatprep.subr.mxu0 0.0
    %2279 = vmatpush1.msra.mxu0 0.0
    %2280 = vmatprep.subr.mxu0 0.0
    %2281 = vmatpush1.msra.mxu0 0.0
    %2282 = vmatprep.subr.mxu0 0.0
    %2283 = vmatpush1.msra.mxu0 0.0
    %2284 = vmatprep.mubr.f32.mxu0 0.0
    %v2285 = vand.u32 %v2032, 4294901760
    %2286 = vmatmul.mubr.f32.gmra.mrb[0].mxu0 %v2285
    %v2287 = vpop.f32.mrb[0].mxu0
    %v2288 = vadd.f32 %v2137, %v2287
    %v2289 = vpop.f32.mrb[0].mxu0
    %2290 = vdwg.mxu0
    %2291 = vmatprep.subr.mxu0 0.0
    %v2292 = vand.u32 %v2033, 4294901760
    %v2293 = vsub.f32 %v2033, %v2292
    %2294 = vmatpush1.msra.mxu0 %v2293
    %2295 = vmatprep.subr.mxu0 0.0
    %v2296 = vand.u32 %v2034, 4294901760
    %v2297 = vsub.f32 %v2034, %v2296
    %2298 = vmatpush1.msra.mxu0 %v2297
    %2299 = vmatprep.subr.mxu0 0.0
    %v2300 = vand.u32 %v2035, 4294901760
    %v2301 = vsub.f32 %v2035, %v2300
    %2302 = vmatpush1.msra.mxu0 %v2301
    %2303 = vmatprep.subr.mxu0 0.0
    %v2304 = vand.u32 %v2036, 4294901760
    %v2305 = vsub.f32 %v2036, %v2304
    %2306 = vmatpush1.msra.mxu0 %v2305
    %2307 = vmatprep.subr.mxu0 0.0
    %v2308 = vand.u32 %v2037, 4294901760
    %v2309 = vsub.f32 %v2037, %v2308
    %2310 = vmatpush1.msra.mxu0 %v2309
    %2311 = vmatprep.subr.mxu0 0.0
    %v2312 = vand.u32 %v2038, 4294901760
    %v2313 = vsub.f32 %v2038, %v2312
    %2314 = vmatpush1.msra.mxu0 %v2313
    %2315 = vmatprep.subr.mxu0 0.0
    %v2316 = vand.u32 %v2039, 4294901760
    %v2317 = vsub.f32 %v2039, %v2316
    %2318 = vmatpush1.msra.mxu0 %v2317
    %2319 = vmatprep.subr.mxu0 0.0
    %v2320 = vand.u32 %v2040, 4294901760
    %v2321 = vsub.f32 %v2040, %v2320
    %2322 = vmatpush1.msra.mxu0 %v2321
    %2323 = vmatprep.subr.mxu0 0.0
    %v2324 = vand.u32 %v2041, 4294901760
    %v2325 = vsub.f32 %v2041, %v2324
    %2326 = vmatpush1.msra.mxu0 %v2325
    %2327 = vmatprep.subr.mxu0 0.0
    %v2328 = vand.u32 %v2042, 4294901760
    %v2329 = vsub.f32 %v2042, %v2328
    %2330 = vmatpush1.msra.mxu0 %v2329
    %2331 = vmatprep.subr.mxu0 0.0
    %v2332 = vand.u32 %v2043, 4294901760
    %v2333 = vsub.f32 %v2043, %v2332
    %2334 = vmatpush1.msra.mxu0 %v2333
    %2335 = vmatprep.subr.mxu0 0.0
    %v2336 = vand.u32 %v2044, 4294901760
    %v2337 = vsub.f32 %v2044, %v2336
    %2338 = vmatpush1.msra.mxu0 %v2337
    %2339 = vmatprep.subr.mxu0 0.0
    %v2340 = vand.u32 %v2045, 4294901760
    %v2341 = vsub.f32 %v2045, %v2340
    %2342 = vmatpush1.msra.mxu0 %v2341
    %2343 = vmatprep.subr.mxu0 0.0
    %v2344 = vand.u32 %v2046, 4294901760
    %v2345 = vsub.f32 %v2046, %v2344
    %2346 = vmatpush1.msra.mxu0 %v2345
    %2347 = vmatprep.subr.mxu0 0.0
    %v2348 = vand.u32 %v2047, 4294901760
    %v2349 = vsub.f32 %v2047, %v2348
    %2350 = vmatpush1.msra.mxu0 %v2349
    %2351 = vmatprep.subr.mxu0 0.0
    %v2352 = vand.u32 %v2048, 4294901760
    %v2353 = vsub.f32 %v2048, %v2352
    %2354 = vmatpush1.msra.mxu0 %v2353
    %2355 = vmatprep.subr.mxu0 0.0
    %2356 = vmatpush1.msra.mxu0 0.0
    %2357 = vmatprep.subr.mxu0 0.0
    %2358 = vmatpush1.msra.mxu0 0.0
    %2359 = vmatprep.subr.mxu0 0.0
    %2360 = vmatpush1.msra.mxu0 0.0
    %2361 = vmatprep.subr.mxu0 0.0
    %2362 = vmatpush1.msra.mxu0 0.0
    %2363 = vmatprep.subr.mxu0 0.0
    %2364 = vmatpush1.msra.mxu0 0.0
    %2365 = vmatprep.subr.mxu0 0.0
    %2366 = vmatpush1.msra.mxu0 0.0
    %2367 = vmatprep.subr.mxu0 0.0
    %2368 = vmatpush1.msra.mxu0 0.0
    %2369 = vmatprep.subr.mxu0 0.0
    %2370 = vmatpush1.msra.mxu0 0.0
    %2371 = vmatprep.subr.mxu0 0.0
    %2372 = vmatpush1.msra.mxu0 0.0
    %2373 = vmatprep.subr.mxu0 0.0
    %2374 = vmatpush1.msra.mxu0 0.0
    %2375 = vmatprep.subr.mxu0 0.0
    %2376 = vmatpush1.msra.mxu0 0.0
    %2377 = vmatprep.subr.mxu0 0.0
    %2378 = vmatpush1.msra.mxu0 0.0
    %2379 = vmatprep.subr.mxu0 0.0
    %2380 = vmatpush1.msra.mxu0 0.0
    %2381 = vmatprep.subr.mxu0 0.0
    %2382 = vmatpush1.msra.mxu0 0.0
    %2383 = vmatprep.subr.mxu0 0.0
    %2384 = vmatpush1.msra.mxu0 0.0
    %2385 = vmatprep.subr.mxu0 0.0
    %2386 = vmatpush1.msra.mxu0 0.0
    %2387 = vmatprep.mubr.f32.mxu0 0.0
    %v2388 = vand.u32 %v2032, 4294901760
    %v2389 = vsub.f32 %v2032, %v2388
    %2390 = vmatmul.mubr.f32.gmra.mrb[0].mxu0 %v2389
    %v2391 = vpop.f32.mrb[0].mxu0
    %v2392 = vadd.f32 %v2288, %v2391
    %v2393 = vpop.f32.mrb[0].mxu0
    %2394 = vdwg.mxu0
    %2395 = vmatprep.subr.mxu0 0.0
    %v2396 = vand.u32 %v2033, 4294901760
    %2397 = vmatpush1.msra.mxu0 %v2396
    %2398 = vmatprep.subr.mxu0 0.0
    %v2399 = vand.u32 %v2034, 4294901760
    %2400 = vmatpush1.msra.mxu0 %v2399
    %2401 = vmatprep.subr.mxu0 0.0
    %v2402 = vand.u32 %v2035, 4294901760
    %2403 = vmatpush1.msra.mxu0 %v2402
    %2404 = vmatprep.subr.mxu0 0.0
    %v2405 = vand.u32 %v2036, 4294901760
    %2406 = vmatpush1.msra.mxu0 %v2405
    %2407 = vmatprep.subr.mxu0 0.0
    %v2408 = vand.u32 %v2037, 4294901760
    %2409 = vmatpush1.msra.mxu0 %v2408
    %2410 = vmatprep.subr.mxu0 0.0
    %v2411 = vand.u32 %v2038, 4294901760
    %2412 = vmatpush1.msra.mxu0 %v2411
    %2413 = vmatprep.subr.mxu0 0.0
    %v2414 = vand.u32 %v2039, 4294901760
    %2415 = vmatpush1.msra.mxu0 %v2414
    %2416 = vmatprep.subr.mxu0 0.0
    %v2417 = vand.u32 %v2040, 4294901760
    %2418 = vmatpush1.msra.mxu0 %v2417
    %2419 = vmatprep.subr.mxu0 0.0
    %v2420 = vand.u32 %v2041, 4294901760
    %2421 = vmatpush1.msra.mxu0 %v2420
    %2422 = vmatprep.subr.mxu0 0.0
    %v2423 = vand.u32 %v2042, 4294901760
    %2424 = vmatpush1.msra.mxu0 %v2423
    %2425 = vmatprep.subr.mxu0 0.0
    %v2426 = vand.u32 %v2043, 4294901760
    %2427 = vmatpush1.msra.mxu0 %v2426
    %2428 = vmatprep.subr.mxu0 0.0
    %v2429 = vand.u32 %v2044, 4294901760
    %2430 = vmatpush1.msra.mxu0 %v2429
    %2431 = vmatprep.subr.mxu0 0.0
    %v2432 = vand.u32 %v2045, 4294901760
    %2433 = vmatpush1.msra.mxu0 %v2432
    %2434 = vmatprep.subr.mxu0 0.0
    %v2435 = vand.u32 %v2046, 4294901760
    %2436 = vmatpush1.msra.mxu0 %v2435
    %2437 = vmatprep.subr.mxu0 0.0
    %v2438 = vand.u32 %v2047, 4294901760
    %2439 = vmatpush1.msra.mxu0 %v2438
    %2440 = vmatprep.subr.mxu0 0.0
    %v2441 = vand.u32 %v2048, 4294901760
    %2442 = vmatpush1.msra.mxu0 %v2441
    %2443 = vmatprep.subr.mxu0 0.0
    %2444 = vmatpush1.msra.mxu0 0.0
    %2445 = vmatprep.subr.mxu0 0.0
    %2446 = vmatpush1.msra.mxu0 0.0
    %2447 = vmatprep.subr.mxu0 0.0
    %2448 = vmatpush1.msra.mxu0 0.0
    %2449 = vmatprep.subr.mxu0 0.0
    %2450 = vmatpush1.msra.mxu0 0.0
    %2451 = vmatprep.subr.mxu0 0.0
    %2452 = vmatpush1.msra.mxu0 0.0
    %2453 = vmatprep.subr.mxu0 0.0
    %2454 = vmatpush1.msra.mxu0 0.0
    %2455 = vmatprep.subr.mxu0 0.0
    %2456 = vmatpush1.msra.mxu0 0.0
    %2457 = vmatprep.subr.mxu0 0.0
    %2458 = vmatpush1.msra.mxu0 0.0
    %2459 = vmatprep.subr.mxu0 0.0
    %2460 = vmatpush1.msra.mxu0 0.0
    %2461 = vmatprep.subr.mxu0 0.0
    %2462 = vmatpush1.msra.mxu0 0.0
    %2463 = vmatprep.subr.mxu0 0.0
    %2464 = vmatpush1.msra.mxu0 0.0
    %2465 = vmatprep.subr.mxu0 0.0
    %2466 = vmatpush1.msra.mxu0 0.0
    %2467 = vmatprep.subr.mxu0 0.0
    %2468 = vmatpush1.msra.mxu0 0.0
    %2469 = vmatprep.subr.mxu0 0.0
    %2470 = vmatpush1.msra.mxu0 0.0
    %2471 = vmatprep.subr.mxu0 0.0
    %2472 = vmatpush1.msra.mxu0 0.0
    %2473 = vmatprep.subr.mxu0 0.0
    %2474 = vmatpush1.msra.mxu0 0.0
    %2475 = vmatprep.mubr.f32.mxu0 0.0
    %v2476 = vand.u32 %v2032, 4294901760
    %v2477 = vsub.f32 %v2032, %v2476
    %v2478 = vand.u32 %v2477, 4294901760
    %2479 = vmatmul.mubr.f32.gmra.mrb[0].mxu0 %v2478
    %v2480 = vpop.f32.mrb[0].mxu0
    %v2481 = vadd.f32 %v2392, %v2480
    %v2482 = vpop.f32.mrb[0].mxu0
    %2483 = vdwg.mxu0
    %2484 = vmatprep.subr.mxu0 0.0
    %v2485 = vand.u32 %v2033, 4294901760
    %v2486 = vsub.f32 %v2033, %v2485
    %v2487 = vand.u32 %v2486, 4294901760
    %2488 = vmatpush1.msra.mxu0 %v2487
    %2489 = vmatprep.subr.mxu0 0.0
    %v2490 = vand.u32 %v2034, 4294901760
    %v2491 = vsub.f32 %v2034, %v2490
    %v2492 = vand.u32 %v2491, 4294901760
    %2493 = vmatpush1.msra.mxu0 %v2492
    %2494 = vmatprep.subr.mxu0 0.0
    %v2495 = vand.u32 %v2035, 4294901760
    %v2496 = vsub.f32 %v2035, %v2495
    %v2497 = vand.u32 %v2496, 4294901760
    %2498 = vmatpush1.msra.mxu0 %v2497
    %2499 = vmatprep.subr.mxu0 0.0
    %v2500 = vand.u32 %v2036, 4294901760
    %v2501 = vsub.f32 %v2036, %v2500
    %v2502 = vand.u32 %v2501, 4294901760
    %2503 = vmatpush1.msra.mxu0 %v2502
    %2504 = vmatprep.subr.mxu0 0.0
    %v2505 = vand.u32 %v2037, 4294901760
    %v2506 = vsub.f32 %v2037, %v2505
    %v2507 = vand.u32 %v2506, 4294901760
    %2508 = vmatpush1.msra.mxu0 %v2507
    %2509 = vmatprep.subr.mxu0 0.0
    %v2510 = vand.u32 %v2038, 4294901760
    %v2511 = vsub.f32 %v2038, %v2510
    %v2512 = vand.u32 %v2511, 4294901760
    %2513 = vmatpush1.msra.mxu0 %v2512
    %2514 = vmatprep.subr.mxu0 0.0
    %v2515 = vand.u32 %v2039, 4294901760
    %v2516 = vsub.f32 %v2039, %v2515
    %v2517 = vand.u32 %v2516, 4294901760
    %2518 = vmatpush1.msra.mxu0 %v2517
    %2519 = vmatprep.subr.mxu0 0.0
    %v2520 = vand.u32 %v2040, 4294901760
    %v2521 = vsub.f32 %v2040, %v2520
    %v2522 = vand.u32 %v2521, 4294901760
    %2523 = vmatpush1.msra.mxu0 %v2522
    %2524 = vmatprep.subr.mxu0 0.0
    %v2525 = vand.u32 %v2041, 4294901760
    %v2526 = vsub.f32 %v2041, %v2525
    %v2527 = vand.u32 %v2526, 4294901760
    %2528 = vmatpush1.msra.mxu0 %v2527
    %2529 = vmatprep.subr.mxu0 0.0
    %v2530 = vand.u32 %v2042, 4294901760
    %v2531 = vsub.f32 %v2042, %v2530
    %v2532 = vand.u32 %v2531, 4294901760
    %2533 = vmatpush1.msra.mxu0 %v2532
    %2534 = vmatprep.subr.mxu0 0.0
    %v2535 = vand.u32 %v2043, 4294901760
    %v2536 = vsub.f32 %v2043, %v2535
    %v2537 = vand.u32 %v2536, 4294901760
    %2538 = vmatpush1.msra.mxu0 %v2537
    %2539 = vmatprep.subr.mxu0 0.0
    %v2540 = vand.u32 %v2044, 4294901760
    %v2541 = vsub.f32 %v2044, %v2540
    %v2542 = vand.u32 %v2541, 4294901760
    %2543 = vmatpush1.msra.mxu0 %v2542
    %2544 = vmatprep.subr.mxu0 0.0
    %v2545 = vand.u32 %v2045, 4294901760
    %v2546 = vsub.f32 %v2045, %v2545
    %v2547 = vand.u32 %v2546, 4294901760
    %2548 = vmatpush1.msra.mxu0 %v2547
    %2549 = vmatprep.subr.mxu0 0.0
    %v2550 = vand.u32 %v2046, 4294901760
    %v2551 = vsub.f32 %v2046, %v2550
    %v2552 = vand.u32 %v2551, 4294901760
    %2553 = vmatpush1.msra.mxu0 %v2552
    %2554 = vmatprep.subr.mxu0 0.0
    %v2555 = vand.u32 %v2047, 4294901760
    %v2556 = vsub.f32 %v2047, %v2555
    %v2557 = vand.u32 %v2556, 4294901760
    %2558 = vmatpush1.msra.mxu0 %v2557
    %2559 = vmatprep.subr.mxu0 0.0
    %v2560 = vand.u32 %v2048, 4294901760
    %v2561 = vsub.f32 %v2048, %v2560
    %v2562 = vand.u32 %v2561, 4294901760
    %2563 = vmatpush1.msra.mxu0 %v2562
    %2564 = vmatprep.subr.mxu0 0.0
    %2565 = vmatpush1.msra.mxu0 0.0
    %2566 = vmatprep.subr.mxu0 0.0
    %2567 = vmatpush1.msra.mxu0 0.0
    %2568 = vmatprep.subr.mxu0 0.0
    %2569 = vmatpush1.msra.mxu0 0.0
    %2570 = vmatprep.subr.mxu0 0.0
    %2571 = vmatpush1.msra.mxu0 0.0
    %2572 = vmatprep.subr.mxu0 0.0
    %2573 = vmatpush1.msra.mxu0 0.0
    %2574 = vmatprep.subr.mxu0 0.0
    %2575 = vmatpush1.msra.mxu0 0.0
    %2576 = vmatprep.subr.mxu0 0.0
    %2577 = vmatpush1.msra.mxu0 0.0
    %2578 = vmatprep.subr.mxu0 0.0
    %2579 = vmatpush1.msra.mxu0 0.0
    %2580 = vmatprep.subr.mxu0 0.0
    %2581 = vmatpush1.msra.mxu0 0.0
    %2582 = vmatprep.subr.mxu0 0.0
    %2583 = vmatpush1.msra.mxu0 0.0
    %2584 = vmatprep.subr.mxu0 0.0
    %2585 = vmatpush1.msra.mxu0 0.0
    %2586 = vmatprep.subr.mxu0 0.0
    %2587 = vmatpush1.msra.mxu0 0.0
    %2588 = vmatprep.subr.mxu0 0.0
    %2589 = vmatpush1.msra.mxu0 0.0
    %2590 = vmatprep.subr.mxu0 0.0
    %2591 = vmatpush1.msra.mxu0 0.0
    %2592 = vmatprep.subr.mxu0 0.0
    %2593 = vmatpush1.msra.mxu0 0.0
    %2594 = vmatprep.subr.mxu0 0.0
    %2595 = vmatpush1.msra.mxu0 0.0
    %2596 = vmatprep.mubr.f32.mxu0 0.0
    %v2597 = vand.u32 %v2032, 4294901760
    %2598 = vmatmul.mubr.f32.gmra.mrb[0].mxu0 %v2597
    %v2599 = vpop.f32.mrb[0].mxu0
    %v2600 = vadd.f32 %v2481, %v2599
    %v2601 = vpop.f32.mrb[0].mxu0
    %2602 = vdwg.mxu0
    %2603 = vmatprep.subr.mxu0 0.0
    %v2604 = vand.u32 %v2033, 4294901760
    %2605 = vmatpush1.msra.mxu0 %v2604
    %2606 = vmatprep.subr.mxu0 0.0
    %v2607 = vand.u32 %v2034, 4294901760
    %2608 = vmatpush1.msra.mxu0 %v2607
    %2609 = vmatprep.subr.mxu0 0.0
    %v2610 = vand.u32 %v2035, 4294901760
    %2611 = vmatpush1.msra.mxu0 %v2610
    %2612 = vmatprep.subr.mxu0 0.0
    %v2613 = vand.u32 %v2036, 4294901760
    %2614 = vmatpush1.msra.mxu0 %v2613
    %2615 = vmatprep.subr.mxu0 0.0
    %v2616 = vand.u32 %v2037, 4294901760
    %2617 = vmatpush1.msra.mxu0 %v2616
    %2618 = vmatprep.subr.mxu0 0.0
    %v2619 = vand.u32 %v2038, 4294901760
    %2620 = vmatpush1.msra.mxu0 %v2619
    %2621 = vmatprep.subr.mxu0 0.0
    %v2622 = vand.u32 %v2039, 4294901760
    %2623 = vmatpush1.msra.mxu0 %v2622
    %2624 = vmatprep.subr.mxu0 0.0
    %v2625 = vand.u32 %v2040, 4294901760
    %2626 = vmatpush1.msra.mxu0 %v2625
    %2627 = vmatprep.subr.mxu0 0.0
    %v2628 = vand.u32 %v2041, 4294901760
    %2629 = vmatpush1.msra.mxu0 %v2628
    %2630 = vmatprep.subr.mxu0 0.0
    %v2631 = vand.u32 %v2042, 4294901760
    %2632 = vmatpush1.msra.mxu0 %v2631
    %2633 = vmatprep.subr.mxu0 0.0
    %v2634 = vand.u32 %v2043, 4294901760
    %2635 = vmatpush1.msra.mxu0 %v2634
    %2636 = vmatprep.subr.mxu0 0.0
    %v2637 = vand.u32 %v2044, 4294901760
    %2638 = vmatpush1.msra.mxu0 %v2637
    %2639 = vmatprep.subr.mxu0 0.0
    %v2640 = vand.u32 %v2045, 4294901760
    %2641 = vmatpush1.msra.mxu0 %v2640
    %2642 = vmatprep.subr.mxu0 0.0
    %v2643 = vand.u32 %v2046, 4294901760
    %2644 = vmatpush1.msra.mxu0 %v2643
    %2645 = vmatprep.subr.mxu0 0.0
    %v2646 = vand.u32 %v2047, 4294901760
    %2647 = vmatpush1.msra.mxu0 %v2646
    %2648 = vmatprep.subr.mxu0 0.0
    %v2649 = vand.u32 %v2048, 4294901760
    %2650 = vmatpush1.msra.mxu0 %v2649
    %2651 = vmatprep.subr.mxu0 0.0
    %2652 = vmatpush1.msra.mxu0 0.0
    %2653 = vmatprep.subr.mxu0 0.0
    %2654 = vmatpush1.msra.mxu0 0.0
    %2655 = vmatprep.subr.mxu0 0.0
    %2656 = vmatpush1.msra.mxu0 0.0
    %2657 = vmatprep.subr.mxu0 0.0
    %2658 = vmatpush1.msra.mxu0 0.0
    %2659 = vmatprep.subr.mxu0 0.0
    %2660 = vmatpush1.msra.mxu0 0.0
    %2661 = vmatprep.subr.mxu0 0.0
    %2662 = vmatpush1.msra.mxu0 0.0
    %2663 = vmatprep.subr.mxu0 0.0
    %2664 = vmatpush1.msra.mxu0 0.0
    %2665 = vmatprep.subr.mxu0 0.0
    %2666 = vmatpush1.msra.mxu0 0.0
    %2667 = vmatprep.subr.mxu0 0.0
    %2668 = vmatpush1.msra.mxu0 0.0
    %2669 = vmatprep.subr.mxu0 0.0
    %2670 = vmatpush1.msra.mxu0 0.0
    %2671 = vmatprep.subr.mxu0 0.0
    %2672 = vmatpush1.msra.mxu0 0.0
    %2673 = vmatprep.subr.mxu0 0.0
    %2674 = vmatpush1.msra.mxu0 0.0
    %2675 = vmatprep.subr.mxu0 0.0
    %2676 = vmatpush1.msra.mxu0 0.0
    %2677 = vmatprep.subr.mxu0 0.0
    %2678 = vmatpush1.msra.mxu0 0.0
    %2679 = vmatprep.subr.mxu0 0.0
    %2680 = vmatpush1.msra.mxu0 0.0
    %2681 = vmatprep.subr.mxu0 0.0
    %2682 = vmatpush1.msra.mxu0 0.0
    %2683 = vmatprep.mubr.f32.mxu0 0.0
    %v2684 = vand.u32 %v2032, 4294901760
    %2685 = vmatmul.mubr.f32.gmra.mrb[0].mxu0 %v2684
    %v2686 = vpop.f32.mrb[0].mxu0
    %v2687 = vadd.f32 %v2600, %v2686
    %v2688 = vpop.f32.mrb[0].mxu0
    %2689 = vdwg.mxu0
    %v2690 = vlog2.pop %v1386
    %v2691 = vmul.f32 %v2690, 0.6931472
    %v2692 = vsub.f32 %v2028, %v2691
    %v2693 = vmul.f32 %v2692, 1.442695
    %v2694 = vpow.pop %v2693
    %v2695 = vsub.f32 1.0, %v2694
    %v2696 = vmul.f32 %v2695, %v2695
    %v2697 = vld [vmem:[#allocation2] sm:$0xff]
    %v2698 = vsub.f32 0.0, %v2687
    %v2699 = vmul.f32 %v2698, %v2696
    %v2700 = vmul.f32 %v2699, %v2692
    %v2701 = vadd.f32 %v2697, %v2700
    %vm2702 = vcmask 261120
    %2703 = vst.msk [vmem:[#allocation2] sm:$0xff] %vm2702, %v2701
    // Predicated region
    $region26: #{tpu_custom_call.1} parent=1 // pred_check
      %p2704 = pneg %p55
    $region27: #{tpu_custom_call.1} parent=1 // pred_check_branch
      %2706 = sbr.rel (%p2704) target = $region29
    $region28: #{tpu_custom_call.1} parent=1 // pred_region
      %v2707 = vld [vmem:[#allocation2] sm:$0xff]
      %v2708 = vsel %vm2702, %v2707, 0.0
      %2709 = vadd.xlane.f32.xlu0 %v2708
      %v2710 = vpop.xlane.xlu0 %2709
      %v2711 = vrot.slane %v2710, 4
      %v2712 = vadd.f32 %v2710, %v2711
      %v2713 = vrot.slane %v2712, 2
      %v2714 = vadd.f32 %v2712, %v2713
      %v2715 = vrot.slane %v2714, 1
      %v2716 = vadd.f32 %v2714, %v2715
      %s2717 = vtos %v2716
      %v2718 = vstv %s2717
      %v2719 = vadd.f32 %v2718, 0.0
      %2720 = vst [vmem:[#allocation3] sm:$0xff] %v2719
    $region29: #{tpu_custom_call.1} parent=1 // pred_fallthru
      _
    // Predicated region
    $region30: #{tpu_custom_call.1} parent=1 // pred_check
      _
    $region31: #{tpu_custom_call.1} parent=1 // pred_check_branch
      %2722 = sbr.rel (0) target = $region33
    $region32: #{tpu_custom_call.1} parent=1 // pred_region
      %s2724 = ssub.s32 128, 128
      %2725 = vsyncadd [#allocation4], %s2724
      %s2727 = sshll.u32 [#allocation3], 4
      %s2728 = int_to_ptr.vmem [resolvable:$true] %s2727
      %2730 = dma.vmem_to_hbm [thread:$0]  %s2728, 128, %s5, [#allocation4]
    $region33: #{tpu_custom_call.1} parent=1 // pred_fallthru
      _
    // Predicated region
    $region34: #{tpu_custom_call.1} parent=1 // pred_check
      _
    $region35: #{tpu_custom_call.1} parent=1 // pred_check_branch
      %2732 = sbr.rel (0) target = $region37
    $region36: #{tpu_custom_call.1} parent=1 // pred_region
      %2733 = dma.done [#allocation4], 128
    $region37: #{tpu_custom_call.1} parent=1 // pred_fallthru
      _
    %2734 = vsyncpa [#allocation4], 1

</llo_original>
